<compile_context>
chip_gen: v6e
topology: v6e:2x2x1
jax: 0.10.0
libtpu: 0.0.40
codegen_flags: <defaults>
</compile_context>

<pallas_src>
import math

import jax
import jax.numpy as jnp
from jax import lax
from jax.experimental import pallas as pl
from jax.experimental.pallas import tpu as pltpu

# ----- module hyper-parameters (small, consistent with the nn.Module) -----
BATCH = 2
SEQ = 8
INPUT_SIZE = 32
HIDDEN_SIZE = 32
NUM_HEADS = 4
HEAD_SIZE = HIDDEN_SIZE // NUM_HEADS


def _mha_kernel(q_ref, k_ref, v_ref, wq_ref, wk_ref, wv_ref,
                bq_ref, bk_ref, bv_ref, wj_ref, bj_ref, out_ref):
    """Single-shot MHA.

    q/k/v_ref : (B*S, Din)
    wq/wk/wv  : (Din, H)   (pre-transposed once at init)
    bq/bk/bv  : (1, H)
    wj_ref    : (H, H), bj_ref: (1, H)
    out_ref   : (B*S, H + NH*S) — [ joint | lane-packed attention weights ]
    """
    f32 = jnp.float32

    # Three full-width projections: (16,32)x(32,32) — one MXU pass each.
    qp = jnp.dot(q_ref[...], wq_ref[...], preferred_element_type=f32) + bq_ref[...]
    kp = jnp.dot(k_ref[...], wk_ref[...], preferred_element_type=f32) + bk_ref[...]
    vp = jnp.dot(v_ref[...], wv_ref[...], preferred_element_type=f32) + bv_ref[...]

    def split_heads(p):
        # (B*S, H) -> (NH*B, S, HEAD); leading index = h*B + b.
        ph = jnp.stack(
            [p[:, h * HEAD_SIZE:(h + 1) * HEAD_SIZE] for h in range(NUM_HEADS)],
            axis=0)                                            # (NH, B*S, HEAD)
        return ph.reshape(NUM_HEADS * BATCH, SEQ, HEAD_SIZE)   # free: sublane split at vreg boundary

    qh = split_heads(qp)
    kh = split_heads(kp)
    vh = split_heads(vp)

    # ONE batched scores matmul over all (head, batch) pairs: (8,8,8)x(8,8,8).
    scale = 1.0 / math.sqrt(float(HEAD_SIZE))
    scores = lax.dot_general(qh, kh, (((2,), (2,)), ((0,), (0,))),
                             preferred_element_type=f32) * scale          # (NH*B, S, S)

    # ONE batched numerically-stable softmax; reciprocal-then-multiply
    # (exact f32 divide for the reciprocal => attention weights stay at 1e-5).
    m = jnp.max(scores, axis=-1, keepdims=True)
    e = jnp.exp(scores - m)
    inv = 1.0 / jnp.sum(e, axis=-1, keepdims=True)
    probs = e * inv                                                        # (NH*B, S, S)

    # ONE batched P@V matmul.
    ctx = lax.dot_general(probs, vh, (((2,), (1,)), ((0,), (0,))),
                          preferred_element_type=f32)                      # (NH*B, S, HEAD)

    # Merge heads back into lanes and apply the joint projection.
    ctx3 = ctx.reshape(NUM_HEADS, BATCH * SEQ, HEAD_SIZE)                  # [h, b*S+i, d]
    ctx_m = jnp.concatenate([ctx3[h] for h in range(NUM_HEADS)], axis=-1)  # (B*S, H)
    joint = jnp.dot(ctx_m, wj_ref[...], preferred_element_type=f32) + bj_ref[...]

    # Lane-pack attention weights: row b*S+i, col h*S+j.
    probs3 = probs.reshape(NUM_HEADS, BATCH * SEQ, SEQ)                    # [h, b*S+i, j]
    attn2 = jnp.concatenate([probs3[h] for h in range(NUM_HEADS)], axis=-1)  # (B*S, NH*S)

    # Single merged lane-packed store: (16, 64).
    out_ref[...] = jnp.concatenate([joint, attn2], axis=-1).astype(out_ref.dtype)


def prepare_kernel_params(params):
    """One-time (init-time) weight preparation — NOT per forward call."""
    return {
        "wq_t": params["wq"].T,                       # (Din, H)
        "wk_t": params["wk"].T,
        "wv_t": params["wv"].T,
        "bq": params["bq"].reshape(1, HIDDEN_SIZE),
        "bk": params["bk"].reshape(1, HIDDEN_SIZE),
        "bv": params["bv"].reshape(1, HIDDEN_SIZE),
        "wj_t": params["wj"].T,                       # (H, H)
        "bj": params["bj"].reshape(1, HIDDEN_SIZE),
    }


def multi_head_attention(q, k, v, kparams):
    """q, k, v: (B, S, INPUT_SIZE) float32. kparams: prepare_kernel_params(...) output.

    Returns (joint_proj (B, S, HIDDEN), attn_weights (B, NUM_HEADS, S, S)).
    """
    B, S, Din = q.shape
    H = HIDDEN_SIZE
    NH = NUM_HEADS
    R = B * S

    vmem_spec = pl.BlockSpec(memory_space=pltpu.MemorySpace.VMEM)

    out = pl.pallas_call(
        _mha_kernel,
        out_shape=jax.ShapeDtypeStruct((R, H + NH * S), jnp.float32),
        in_specs=[vmem_spec] * 11,
        out_specs=vmem_spec,
    )(q.reshape(R, Din), k.reshape(R, Din), v.reshape(R, Din),
      kparams["wq_t"], kparams["wk_t"], kparams["wv_t"],
      kparams["bq"], kparams["bk"], kparams["bv"],
      kparams["wj_t"], kparams["bj"])

    joint = out[:, :H].reshape(B, S, H).astype(q.dtype)
    # out[b*S+i, H + h*S + j] == weights[b, h, i, j]
    attn = out[:, H:].reshape(B, S, NH, S).transpose(0, 2, 1, 3)
    return joint, attn


def _reference(q, k, v, params):
    """Pure-JAX reference mirroring the PyTorch forward pass."""
    def linear(x, w, b):
        return x @ w.T + b

    B, S, _ = q.shape
    qp = linear(q, params["wq"], params["bq"]).reshape(B, S, NUM_HEADS, HEAD_SIZE).transpose(0, 2, 1, 3)
    kp = linear(k, params["wk"], params["bk"]).reshape(B, S, NUM_HEADS, HEAD_SIZE).transpose(0, 2, 1, 3)
    vp = linear(v, params["wv"], params["bv"]).reshape(B, S, NUM_HEADS, HEAD_SIZE).transpose(0, 2, 1, 3)
    scores = jnp.einsum("bhqd,bhkd->bhqk", qp, kp) / math.sqrt(float(HEAD_SIZE))
    w = jax.nn.softmax(scores, axis=-1)
    ctx = jnp.einsum("bhqk,bhkd->bhqd", w, vp).transpose(0, 2, 1, 3).reshape(B, S, HIDDEN_SIZE)
    joint = linear(ctx, params["wj"], params["bj"])
    return joint, w


def _init_params(key):
    """Deterministic init; nn.Linear-style uniform(-1/sqrt(fan_in), 1/sqrt(fan_in))."""
    ks = jax.random.split(key, 8)
    bnd_in = 1.0 / math.sqrt(INPUT_SIZE)
    bnd_h = 1.0 / math.sqrt(HIDDEN_SIZE)
    u = jax.random.uniform
    return {
        "wq": u(ks[0], (HIDDEN_SIZE, INPUT_SIZE), jnp.float32, -bnd_in, bnd_in),
        "bq": u(ks[1], (HIDDEN_SIZE,), jnp.float32, -bnd_in, bnd_in),
        "wk": u(ks[2], (HIDDEN_SIZE, INPUT_SIZE), jnp.float32, -bnd_in, bnd_in),
        "bk": u(ks[3], (HIDDEN_SIZE,), jnp.float32, -bnd_in, bnd_in),
        "wv": u(ks[4], (HIDDEN_SIZE, INPUT_SIZE), jnp.float32, -bnd_in, bnd_in),
        "bv": u(ks[5], (HIDDEN_SIZE,), jnp.float32, -bnd_in, bnd_in),
        "wj": u(ks[6], (HIDDEN_SIZE, HIDDEN_SIZE), jnp.float32, -bnd_h, bnd_h),
        "bj": u(ks[7], (HIDDEN_SIZE,), jnp.float32, -bnd_h, bnd_h),
    }


if __name__ == "__main__":
    key = jax.random.PRNGKey(0)
    kq, kk, kv, kp = jax.random.split(key, 4)
    q = jax.random.normal(kq, (BATCH, SEQ, INPUT_SIZE), jnp.float32)
    k = jax.random.normal(kk, (BATCH, SEQ, INPUT_SIZE), jnp.float32)
    v = jax.random.normal(kv, (BATCH, SEQ, INPUT_SIZE), jnp.float32)
    params = _init_params(kp)

    # One-time weight preparation (outside the per-call forward path).
    kernel_params = prepare_kernel_params(params)
    jax.block_until_ready(kernel_params)

    mha = jax.jit(multi_head_attention)
    out, attn = mha(q, k, v, kernel_params)
    jax.block_until_ready(out)
    jax.block_until_ready(attn)

    ref_out, ref_attn = _reference(q, k, v, params)
    assert jnp.allclose(out, ref_out, atol=1e-4, rtol=1e-4), "output mismatch"
    assert jnp.allclose(attn, ref_attn, atol=1e-5, rtol=1e-5), "attention weights mismatch"

    print("KERNEL_OK")
</pallas_src>

<mosaic_0001>
module attributes {stable_mosaic.version = 11 : i64} {
  func.func @_mha_kernel(%arg0: memref<16x32xf32, #tpu.memory_space<vmem>>, %arg1: memref<16x32xf32, #tpu.memory_space<vmem>>, %arg2: memref<16x32xf32, #tpu.memory_space<vmem>>, %arg3: memref<32x32xf32, #tpu.memory_space<vmem>>, %arg4: memref<32x32xf32, #tpu.memory_space<vmem>>, %arg5: memref<32x32xf32, #tpu.memory_space<vmem>>, %arg6: memref<1x32xf32, #tpu.memory_space<vmem>>, %arg7: memref<1x32xf32, #tpu.memory_space<vmem>>, %arg8: memref<1x32xf32, #tpu.memory_space<vmem>>, %arg9: memref<32x32xf32, #tpu.memory_space<vmem>>, %arg10: memref<1x32xf32, #tpu.memory_space<vmem>>, %arg11: memref<16x64xf32, #tpu.memory_space<vmem>>) attributes {dimension_semantics = [], scalar_prefetch = 0 : i64, scratch_operands = 0 : i64, tpu.core_type = #tpu.core_type<tc>} {
    %c0 = arith.constant 0 : index
    %c0_0 = arith.constant 0 : index
    %0 = vector.load %arg0[%c0, %c0_0] : memref<16x32xf32, #tpu.memory_space<vmem>>, vector<16x32xf32>
    %c0_1 = arith.constant 0 : index
    %c0_2 = arith.constant 0 : index
    %1 = vector.load %arg3[%c0_1, %c0_2] : memref<32x32xf32, #tpu.memory_space<vmem>>, vector<32x32xf32>
    %cst = arith.constant dense<0.000000e+00> : vector<16x32xf32>
    %2 = tpu.matmul %0, %1, %cst {dimension_numbers = #tpu.dot_dimension_numbers<[1], [0], [0], [1], [0, 0, 1, 1], [], []>} : vector<16x32xf32>, vector<32x32xf32>, vector<16x32xf32> -> vector<16x32xf32>
    %c0_3 = arith.constant 0 : index
    %c0_4 = arith.constant 0 : index
    %3 = vector.load %arg6[%c0_3, %c0_4] : memref<1x32xf32, #tpu.memory_space<vmem>>, vector<1x32xf32>
    %4 = vector.broadcast %3 : vector<1x32xf32> to vector<16x32xf32>
    %5 = arith.addf %2, %4 : vector<16x32xf32>
    %c0_5 = arith.constant 0 : index
    %c0_6 = arith.constant 0 : index
    %6 = vector.load %arg1[%c0_5, %c0_6] : memref<16x32xf32, #tpu.memory_space<vmem>>, vector<16x32xf32>
    %c0_7 = arith.constant 0 : index
    %c0_8 = arith.constant 0 : index
    %7 = vector.load %arg4[%c0_7, %c0_8] : memref<32x32xf32, #tpu.memory_space<vmem>>, vector<32x32xf32>
    %cst_9 = arith.constant dense<0.000000e+00> : vector<16x32xf32>
    %8 = tpu.matmul %6, %7, %cst_9 {dimension_numbers = #tpu.dot_dimension_numbers<[1], [0], [0], [1], [0, 0, 1, 1], [], []>} : vector<16x32xf32>, vector<32x32xf32>, vector<16x32xf32> -> vector<16x32xf32>
    %c0_10 = arith.constant 0 : index
    %c0_11 = arith.constant 0 : index
    %9 = vector.load %arg7[%c0_10, %c0_11] : memref<1x32xf32, #tpu.memory_space<vmem>>, vector<1x32xf32>
    %10 = vector.broadcast %9 : vector<1x32xf32> to vector<16x32xf32>
    %11 = arith.addf %8, %10 : vector<16x32xf32>
    %c0_12 = arith.constant 0 : index
    %c0_13 = arith.constant 0 : index
    %12 = vector.load %arg2[%c0_12, %c0_13] : memref<16x32xf32, #tpu.memory_space<vmem>>, vector<16x32xf32>
    %c0_14 = arith.constant 0 : index
    %c0_15 = arith.constant 0 : index
    %13 = vector.load %arg5[%c0_14, %c0_15] : memref<32x32xf32, #tpu.memory_space<vmem>>, vector<32x32xf32>
    %cst_16 = arith.constant dense<0.000000e+00> : vector<16x32xf32>
    %14 = tpu.matmul %12, %13, %cst_16 {dimension_numbers = #tpu.dot_dimension_numbers<[1], [0], [0], [1], [0, 0, 1, 1], [], []>} : vector<16x32xf32>, vector<32x32xf32>, vector<16x32xf32> -> vector<16x32xf32>
    %c0_17 = arith.constant 0 : index
    %c0_18 = arith.constant 0 : index
    %15 = vector.load %arg8[%c0_17, %c0_18] : memref<1x32xf32, #tpu.memory_space<vmem>>, vector<1x32xf32>
    %16 = vector.broadcast %15 : vector<1x32xf32> to vector<16x32xf32>
    %17 = arith.addf %14, %16 : vector<16x32xf32>
    %18 = vector.extract_strided_slice %5 {offsets = [0, 0], sizes = [16, 8], strides = [1, 1]} : vector<16x32xf32> to vector<16x8xf32>
    %19 = vector.extract_strided_slice %5 {offsets = [0, 8], sizes = [16, 8], strides = [1, 1]} : vector<16x32xf32> to vector<16x8xf32>
    %20 = vector.extract_strided_slice %5 {offsets = [0, 16], sizes = [16, 8], strides = [1, 1]} : vector<16x32xf32> to vector<16x8xf32>
    %21 = vector.extract_strided_slice %5 {offsets = [0, 24], sizes = [16, 8], strides = [1, 1]} : vector<16x32xf32> to vector<16x8xf32>
    %22 = vector.shape_cast %18 : vector<16x8xf32> to vector<1x16x8xf32>
    %23 = vector.shape_cast %19 : vector<16x8xf32> to vector<1x16x8xf32>
    %24 = vector.shape_cast %20 : vector<16x8xf32> to vector<1x16x8xf32>
    %25 = vector.shape_cast %21 : vector<16x8xf32> to vector<1x16x8xf32>
    %26 = tpu.concatenate %22, %23, %24, %25 in 0 : vector<1x16x8xf32>, vector<1x16x8xf32>, vector<1x16x8xf32>, vector<1x16x8xf32> -> vector<4x16x8xf32>
    %27 = vector.shape_cast %26 : vector<4x16x8xf32> to vector<8x8x8xf32>
    %28 = vector.extract_strided_slice %11 {offsets = [0, 0], sizes = [16, 8], strides = [1, 1]} : vector<16x32xf32> to vector<16x8xf32>
    %29 = vector.extract_strided_slice %11 {offsets = [0, 8], sizes = [16, 8], strides = [1, 1]} : vector<16x32xf32> to vector<16x8xf32>
    %30 = vector.extract_strided_slice %11 {offsets = [0, 16], sizes = [16, 8], strides = [1, 1]} : vector<16x32xf32> to vector<16x8xf32>
    %31 = vector.extract_strided_slice %11 {offsets = [0, 24], sizes = [16, 8], strides = [1, 1]} : vector<16x32xf32> to vector<16x8xf32>
    %32 = vector.shape_cast %28 : vector<16x8xf32> to vector<1x16x8xf32>
    %33 = vector.shape_cast %29 : vector<16x8xf32> to vector<1x16x8xf32>
    %34 = vector.shape_cast %30 : vector<16x8xf32> to vector<1x16x8xf32>
    %35 = vector.shape_cast %31 : vector<16x8xf32> to vector<1x16x8xf32>
    %36 = tpu.concatenate %32, %33, %34, %35 in 0 : vector<1x16x8xf32>, vector<1x16x8xf32>, vector<1x16x8xf32>, vector<1x16x8xf32> -> vector<4x16x8xf32>
    %37 = vector.shape_cast %36 : vector<4x16x8xf32> to vector<8x8x8xf32>
    %38 = vector.extract_strided_slice %17 {offsets = [0, 0], sizes = [16, 8], strides = [1, 1]} : vector<16x32xf32> to vector<16x8xf32>
    %39 = vector.extract_strided_slice %17 {offsets = [0, 8], sizes = [16, 8], strides = [1, 1]} : vector<16x32xf32> to vector<16x8xf32>
    %40 = vector.extract_strided_slice %17 {offsets = [0, 16], sizes = [16, 8], strides = [1, 1]} : vector<16x32xf32> to vector<16x8xf32>
    %41 = vector.extract_strided_slice %17 {offsets = [0, 24], sizes = [16, 8], strides = [1, 1]} : vector<16x32xf32> to vector<16x8xf32>
    %42 = vector.shape_cast %38 : vector<16x8xf32> to vector<1x16x8xf32>
    %43 = vector.shape_cast %39 : vector<16x8xf32> to vector<1x16x8xf32>
    %44 = vector.shape_cast %40 : vector<16x8xf32> to vector<1x16x8xf32>
    %45 = vector.shape_cast %41 : vector<16x8xf32> to vector<1x16x8xf32>
    %46 = tpu.concatenate %42, %43, %44, %45 in 0 : vector<1x16x8xf32>, vector<1x16x8xf32>, vector<1x16x8xf32>, vector<1x16x8xf32> -> vector<4x16x8xf32>
    %47 = vector.shape_cast %46 : vector<4x16x8xf32> to vector<8x8x8xf32>
    %cst_19 = arith.constant dense<0.000000e+00> : vector<8x8x8xf32>
    %48 = tpu.matmul %27, %37, %cst_19 {dimension_numbers = #tpu.dot_dimension_numbers<[2], [2], [1], [1], [0, 0, 0, 1, 1, 1], [0], [0]>} : vector<8x8x8xf32>, vector<8x8x8xf32>, vector<8x8x8xf32> -> vector<8x8x8xf32>
    %cst_20 = arith.constant 0.353553385 : f32
    %49 = vector.broadcast %cst_20 : f32 to vector<8x8x8xf32>
    %50 = arith.mulf %48, %49 : vector<8x8x8xf32>
    %cst_21 = arith.constant dense<0xFF800000> : vector<8x8xf32>
    %51 = vector.multi_reduction <maximumf>, %50, %cst_21 [2] : vector<8x8x8xf32> to vector<8x8xf32>
    %52 = vector.shape_cast %51 : vector<8x8xf32> to vector<8x8x1xf32>
    %53 = vector.broadcast %52 : vector<8x8x1xf32> to vector<8x8x8xf32>
    %54 = arith.subf %50, %53 : vector<8x8x8xf32>
    %55 = math.exp %54 : vector<8x8x8xf32>
    %cst_22 = arith.constant dense<0.000000e+00> : vector<8x8xf32>
    %56 = vector.multi_reduction <add>, %55, %cst_22 [2] : vector<8x8x8xf32> to vector<8x8xf32>
    %57 = vector.shape_cast %56 : vector<8x8xf32> to vector<8x8x1xf32>
    %cst_23 = arith.constant 1.000000e+00 : f32
    %58 = vector.broadcast %cst_23 : f32 to vector<8x8x1xf32>
    %59 = arith.divf %58, %57 : vector<8x8x1xf32>
    %60 = vector.broadcast %59 : vector<8x8x1xf32> to vector<8x8x8xf32>
    %61 = arith.mulf %55, %60 : vector<8x8x8xf32>
    %cst_24 = arith.constant dense<0.000000e+00> : vector<8x8x8xf32>
    %62 = tpu.matmul %61, %47, %cst_24 {dimension_numbers = #tpu.dot_dimension_numbers<[2], [1], [1], [2], [0, 0, 0, 1, 1, 2], [0], [0]>} : vector<8x8x8xf32>, vector<8x8x8xf32>, vector<8x8x8xf32> -> vector<8x8x8xf32>
    %63 = vector.shape_cast %62 : vector<8x8x8xf32> to vector<4x16x8xf32>
    %64 = vector.extract_strided_slice %63 {offsets = [0, 0, 0], sizes = [1, 16, 8], strides = [1, 1, 1]} : vector<4x16x8xf32> to vector<1x16x8xf32>
    %65 = vector.shape_cast %64 : vector<1x16x8xf32> to vector<16x8xf32>
    %66 = vector.extract_strided_slice %63 {offsets = [1, 0, 0], sizes = [1, 16, 8], strides = [1, 1, 1]} : vector<4x16x8xf32> to vector<1x16x8xf32>
    %67 = vector.shape_cast %66 : vector<1x16x8xf32> to vector<16x8xf32>
    %68 = vector.extract_strided_slice %63 {offsets = [2, 0, 0], sizes = [1, 16, 8], strides = [1, 1, 1]} : vector<4x16x8xf32> to vector<1x16x8xf32>
    %69 = vector.shape_cast %68 : vector<1x16x8xf32> to vector<16x8xf32>
    %70 = vector.extract_strided_slice %63 {offsets = [3, 0, 0], sizes = [1, 16, 8], strides = [1, 1, 1]} : vector<4x16x8xf32> to vector<1x16x8xf32>
    %71 = vector.shape_cast %70 : vector<1x16x8xf32> to vector<16x8xf32>
    %72 = tpu.concatenate %65, %67, %69, %71 in 1 : vector<16x8xf32>, vector<16x8xf32>, vector<16x8xf32>, vector<16x8xf32> -> vector<16x32xf32>
    %c0_25 = arith.constant 0 : index
    %c0_26 = arith.constant 0 : index
    %73 = vector.load %arg9[%c0_25, %c0_26] : memref<32x32xf32, #tpu.memory_space<vmem>>, vector<32x32xf32>
    %cst_27 = arith.constant dense<0.000000e+00> : vector<16x32xf32>
    %74 = tpu.matmul %72, %73, %cst_27 {dimension_numbers = #tpu.dot_dimension_numbers<[1], [0], [0], [1], [0, 0, 1, 1], [], []>} : vector<16x32xf32>, vector<32x32xf32>, vector<16x32xf32> -> vector<16x32xf32>
    %c0_28 = arith.constant 0 : index
    %c0_29 = arith.constant 0 : index
    %75 = vector.load %arg10[%c0_28, %c0_29] : memref<1x32xf32, #tpu.memory_space<vmem>>, vector<1x32xf32>
    %76 = vector.broadcast %75 : vector<1x32xf32> to vector<16x32xf32>
    %77 = arith.addf %74, %76 : vector<16x32xf32>
    %78 = vector.shape_cast %61 : vector<8x8x8xf32> to vector<4x16x8xf32>
    %79 = vector.extract_strided_slice %78 {offsets = [0, 0, 0], sizes = [1, 16, 8], strides = [1, 1, 1]} : vector<4x16x8xf32> to vector<1x16x8xf32>
    %80 = vector.shape_cast %79 : vector<1x16x8xf32> to vector<16x8xf32>
    %81 = vector.extract_strided_slice %78 {offsets = [1, 0, 0], sizes = [1, 16, 8], strides = [1, 1, 1]} : vector<4x16x8xf32> to vector<1x16x8xf32>
    %82 = vector.shape_cast %81 : vector<1x16x8xf32> to vector<16x8xf32>
    %83 = vector.extract_strided_slice %78 {offsets = [2, 0, 0], sizes = [1, 16, 8], strides = [1, 1, 1]} : vector<4x16x8xf32> to vector<1x16x8xf32>
    %84 = vector.shape_cast %83 : vector<1x16x8xf32> to vector<16x8xf32>
    %85 = vector.extract_strided_slice %78 {offsets = [3, 0, 0], sizes = [1, 16, 8], strides = [1, 1, 1]} : vector<4x16x8xf32> to vector<1x16x8xf32>
    %86 = vector.shape_cast %85 : vector<1x16x8xf32> to vector<16x8xf32>
    %87 = tpu.concatenate %80, %82, %84, %86 in 1 : vector<16x8xf32>, vector<16x8xf32>, vector<16x8xf32>, vector<16x8xf32> -> vector<16x32xf32>
    %88 = tpu.concatenate %77, %87 in 1 : vector<16x32xf32>, vector<16x32xf32> -> vector<16x64xf32>
    %c0_30 = arith.constant 0 : index
    %c0_31 = arith.constant 0 : index
    %89 = vector.load %arg11[%c0_30, %c0_31] : memref<16x64xf32, #tpu.memory_space<vmem>>, vector<16x64xf32>
    tpu.vector_store %arg11[%c0_30, %c0_31], %88 {strides = array<i32>} : memref<16x64xf32, #tpu.memory_space<vmem>>, vector<16x64xf32>,
    return
  }
}

</mosaic_0001>

<llo_original>
// kernel: multi_head_attention.1
$region0: #{multi_head_attention.1}
  #allocation0 [shape = 'u32[]', space=smem, size = 0x4, offset = 0x4, fixed_abs, tag = 'smem constant byte address 0x4 - core index']
  #allocation1 [shape = 'u32[144,128]{1,0:T(1,128)}', space=vmem, size = 0x12000, scoped, tag = 'internal scratch']
  %s0 = inlined_call_operand.hbm [shape: f32[16,32], index: 0, kind: input, shape index: {}]
  %s1 = inlined_call_operand.hbm [shape: f32[16,32], index: 1, kind: input, shape index: {}]
  %s2 = inlined_call_operand.hbm [shape: f32[16,32], index: 2, kind: input, shape index: {}]
  %s3 = inlined_call_operand.hbm [shape: f32[32,32], index: 3, kind: input, shape index: {}]
  %s4 = inlined_call_operand.hbm [shape: f32[32,32], index: 4, kind: input, shape index: {}]
  %s5 = inlined_call_operand.hbm [shape: f32[32,32], index: 5, kind: input, shape index: {}]
  %s6 = inlined_call_operand.vmem [shape: f32[1,32], index: 6, kind: input, shape index: {}]
  %s7 = inlined_call_operand.vmem [shape: f32[1,32], index: 7, kind: input, shape index: {}]
  %s8 = inlined_call_operand.vmem [shape: f32[1,32], index: 8, kind: input, shape index: {}]
  %s9 = inlined_call_operand.hbm [shape: f32[32,32], index: 9, kind: input, shape index: {}]
  %s10 = inlined_call_operand.vmem [shape: f32[1,32], index: 10, kind: input, shape index: {}]
  %s11 = inlined_call_operand.vmem [shape: f32[16,64], index: 11, kind: output, shape index: {}]
  %s12 = sld [smem:[#allocation0]]
  $region82: #{multi_head_attention.1} parent=0
    _
  %s14 = ssub.s32 1, %s12
  %s15 = scalar_select 0, %s14, %s12
  $region1: #{multi_head_attention.1} parent=0
    #allocation2 [shape = 'u8[8192]{0}', space=vmem, size = 0x2000, scoped, tag = 'input window, operand 0, single buffered']
    #allocation3 [shape = 's32[1]{0}', space=sflag, size = 0x4, scoped, tag = 'scoped memory for multi_head_attention.1']
    #allocation4 [shape = 'u8[8192]{0}', space=vmem, size = 0x2000, scoped, tag = 'input window, operand 1, single buffered']
    #allocation5 [shape = 's32[1]{0}', space=sflag, size = 0x4, scoped, tag = 'scoped memory for multi_head_attention.1']
    #allocation6 [shape = 'u8[8192]{0}', space=vmem, size = 0x2000, scoped, tag = 'input window, operand 2, single buffered']
    #allocation7 [shape = 'u8[16384]{0}', space=vmem, size = 0x4000, scoped, tag = 'input window, operand 3, single buffered']
    #allocation8 [shape = 's32[1]{0}', space=sflag, size = 0x4, scoped, tag = 'scoped memory for multi_head_attention.1']
    #allocation9 [shape = 'u8[16384]{0}', space=vmem, size = 0x4000, scoped, tag = 'input window, operand 4, single buffered']
    #allocation10 [shape = 'u8[16384]{0}', space=vmem, size = 0x4000, scoped, tag = 'input window, operand 5, single buffered']
    #allocation11 [shape = 's32[1]{0}', space=sflag, size = 0x4, scoped, tag = 'scoped memory for multi_head_attention.1']
    #allocation12 [shape = 'u8[16384]{0}', space=vmem, size = 0x4000, scoped, tag = 'input window, operand 9, single buffered']
    %16 = vsyncpa [#allocation3], 0
    %17 = vsyncpa [#allocation5], 0
    %18 = vsyncpa [#allocation8], 0
    %19 = vsyncpa [#allocation11], 0
    // Predicated region
    $region2: #{multi_head_attention.1} parent=1 // pred_check
      _
    $region3: #{multi_head_attention.1} parent=1 // pred_check_branch
      %21 = sbr.rel (0) target = $region5
    $region4: #{multi_head_attention.1} parent=1 // pred_region
      %s23 = ssub.s32 256, 256
      %24 = vsyncadd [#allocation3], %s23
      %s25 = sshll.u32 [#allocation2], 4
      %s26 = int_to_ptr.vmem [resolvable:$true] %s25
      %31 = dma.hbm_to_vmem [thread:$0]  %s0, 256, %s26, [#allocation3], 128, 128, 8
    $region5: #{multi_head_attention.1} parent=1 // pred_fallthru
      _
    // Predicated region
    $region6: #{multi_head_attention.1} parent=1 // pred_check
      _
    $region7: #{multi_head_attention.1} parent=1 // pred_check_branch
      %33 = sbr.rel (0) target = $region9
    $region8: #{multi_head_attention.1} parent=1 // pred_region
      %s35 = ssub.s32 256, 256
      %36 = vsyncadd [#allocation5], %s35
      %s37 = sshll.u32 [#allocation4], 4
      %s38 = int_to_ptr.vmem [resolvable:$true] %s37
      %43 = dma.hbm_to_vmem [thread:$0]  %s1, 256, %s38, [#allocation5], 128, 128, 8
    $region9: #{multi_head_attention.1} parent=1 // pred_fallthru
      _
    // Predicated region
    $region10: #{multi_head_attention.1} parent=1 // pred_check
      _
    $region11: #{multi_head_attention.1} parent=1 // pred_check_branch
      %45 = sbr.rel (0) target = $region13
    $region12: #{multi_head_attention.1} parent=1 // pred_region
      %s47 = ssub.s32 256, 256
      %48 = vsyncadd [#allocation5], %s47
      %s49 = sshll.u32 [#allocation6], 4
      %s50 = int_to_ptr.vmem [resolvable:$true] %s49
      %55 = dma.hbm_to_vmem [thread:$0]  %s2, 256, %s50, [#allocation5], 128, 128, 8
    $region13: #{multi_head_attention.1} parent=1 // pred_fallthru
      _
    // Predicated region
    $region14: #{multi_head_attention.1} parent=1 // pred_check
      _
    $region15: #{multi_head_attention.1} parent=1 // pred_check_branch
      %57 = sbr.rel (0) target = $region17
    $region16: #{multi_head_attention.1} parent=1 // pred_region
      %s59 = ssub.s32 512, 512
      %60 = vsyncadd [#allocation8], %s59
      %s61 = sshll.u32 [#allocation7], 4
      %s62 = int_to_ptr.vmem [resolvable:$true] %s61
      %67 = dma.hbm_to_vmem [thread:$0]  %s3, 512, %s62, [#allocation8], 128, 128, 8
    $region17: #{multi_head_attention.1} parent=1 // pred_fallthru
      _
    // Predicated region
    $region18: #{multi_head_attention.1} parent=1 // pred_check
      _
    $region19: #{multi_head_attention.1} parent=1 // pred_check_branch
      %69 = sbr.rel (0) target = $region21
    $region20: #{multi_head_attention.1} parent=1 // pred_region
      %s71 = ssub.s32 512, 512
      %72 = vsyncadd [#allocation8], %s71
      %s73 = sshll.u32 [#allocation9], 4
      %s74 = int_to_ptr.vmem [resolvable:$true] %s73
      %79 = dma.hbm_to_vmem [thread:$0]  %s4, 512, %s74, [#allocation8], 128, 128, 8
    $region21: #{multi_head_attention.1} parent=1 // pred_fallthru
      _
    // Predicated region
    $region22: #{multi_head_attention.1} parent=1 // pred_check
      _
    $region23: #{multi_head_attention.1} parent=1 // pred_check_branch
      %81 = sbr.rel (0) target = $region25
    $region24: #{multi_head_attention.1} parent=1 // pred_region
      %s83 = ssub.s32 512, 512
      %84 = vsyncadd [#allocation11], %s83
      %s85 = sshll.u32 [#allocation10], 4
      %s86 = int_to_ptr.vmem [resolvable:$true] %s85
      %91 = dma.hbm_to_vmem [thread:$0]  %s5, 512, %s86, [#allocation11], 128, 128, 8
    $region25: #{multi_head_attention.1} parent=1 // pred_fallthru
      _
    // Predicated region
    $region26: #{multi_head_attention.1} parent=1 // pred_check
      _
    $region27: #{multi_head_attention.1} parent=1 // pred_check_branch
      %93 = sbr.rel (0) target = $region29
    $region28: #{multi_head_attention.1} parent=1 // pred_region
      _
    $region29: #{multi_head_attention.1} parent=1 // pred_fallthru
      _
    // Predicated region
    $region30: #{multi_head_attention.1} parent=1 // pred_check
      _
    $region31: #{multi_head_attention.1} parent=1 // pred_check_branch
      %95 = sbr.rel (0) target = $region33
    $region32: #{multi_head_attention.1} parent=1 // pred_region
      _
    $region33: #{multi_head_attention.1} parent=1 // pred_fallthru
      _
    // Predicated region
    $region34: #{multi_head_attention.1} parent=1 // pred_check
      _
    $region35: #{multi_head_attention.1} parent=1 // pred_check_branch
      %97 = sbr.rel (0) target = $region37
    $region36: #{multi_head_attention.1} parent=1 // pred_region
      _
    $region37: #{multi_head_attention.1} parent=1 // pred_fallthru
      _
    // Predicated region
    $region38: #{multi_head_attention.1} parent=1 // pred_check
      _
    $region39: #{multi_head_attention.1} parent=1 // pred_check_branch
      %99 = sbr.rel (0) target = $region41
    $region40: #{multi_head_attention.1} parent=1 // pred_region
      %s101 = ssub.s32 512, 512
      %102 = vsyncadd [#allocation11], %s101
      %s103 = sshll.u32 [#allocation12], 4
      %s104 = int_to_ptr.vmem [resolvable:$true] %s103
      %109 = dma.hbm_to_vmem [thread:$0]  %s9, 512, %s104, [#allocation11], 128, 128, 8
    $region41: #{multi_head_attention.1} parent=1 // pred_fallthru
      _
    // Predicated region
    $region42: #{multi_head_attention.1} parent=1 // pred_check
      _
    $region43: #{multi_head_attention.1} parent=1 // pred_check_branch
      %111 = sbr.rel (0) target = $region45
    $region44: #{multi_head_attention.1} parent=1 // pred_region
      _
    $region45: #{multi_head_attention.1} parent=1 // pred_fallthru
      _
    // Predicated region
    $region46: #{multi_head_attention.1} parent=1 // pred_check
      _
    $region47: #{multi_head_attention.1} parent=1 // pred_check_branch
      %113 = sbr.rel (0) target = $region49
    $region48: #{multi_head_attention.1} parent=1 // pred_region
      %114 = dma.done [#allocation3], 256
    $region49: #{multi_head_attention.1} parent=1 // pred_fallthru
      _
    // Predicated region
    $region50: #{multi_head_attention.1} parent=1 // pred_check
      _
    $region51: #{multi_head_attention.1} parent=1 // pred_check_branch
      %116 = sbr.rel (0) target = $region53
    $region52: #{multi_head_attention.1} parent=1 // pred_region
      %117 = dma.done [#allocation5], 256
    $region53: #{multi_head_attention.1} parent=1 // pred_fallthru
      _
    // Predicated region
    $region54: #{multi_head_attention.1} parent=1 // pred_check
      _
    $region55: #{multi_head_attention.1} parent=1 // pred_check_branch
      %119 = sbr.rel (0) target = $region57
    $region56: #{multi_head_attention.1} parent=1 // pred_region
      %120 = dma.done [#allocation5], 256
    $region57: #{multi_head_attention.1} parent=1 // pred_fallthru
      _
    // Predicated region
    $region58: #{multi_head_attention.1} parent=1 // pred_check
      _
    $region59: #{multi_head_attention.1} parent=1 // pred_check_branch
      %122 = sbr.rel (0) target = $region61
    $region60: #{multi_head_attention.1} parent=1 // pred_region
      %123 = dma.done [#allocation8], 512
    $region61: #{multi_head_attention.1} parent=1 // pred_fallthru
      _
    // Predicated region
    $region62: #{multi_head_attention.1} parent=1 // pred_check
      _
    $region63: #{multi_head_attention.1} parent=1 // pred_check_branch
      %125 = sbr.rel (0) target = $region65
    $region64: #{multi_head_attention.1} parent=1 // pred_region
      %126 = dma.done [#allocation8], 512
    $region65: #{multi_head_attention.1} parent=1 // pred_fallthru
      _
    // Predicated region
    $region66: #{multi_head_attention.1} parent=1 // pred_check
      _
    $region67: #{multi_head_attention.1} parent=1 // pred_check_branch
      %128 = sbr.rel (0) target = $region69
    $region68: #{multi_head_attention.1} parent=1 // pred_region
      %129 = dma.done [#allocation11], 512
    $region69: #{multi_head_attention.1} parent=1 // pred_fallthru
      _
    // Predicated region
    $region70: #{multi_head_attention.1} parent=1 // pred_check
      _
    $region71: #{multi_head_attention.1} parent=1 // pred_check_branch
      %131 = sbr.rel (0) target = $region73
    $region72: #{multi_head_attention.1} parent=1 // pred_region
      %132 = dma.done [#allocation11], 512
    $region73: #{multi_head_attention.1} parent=1 // pred_fallthru
      _
    %v133 = vld [vmem:[#allocation2] sm:$0xff]
    %v134 = vld [vmem:[#allocation2 + $0x8] sm:$0xff]
    %v135 = vld [vmem:[#allocation7] sm:$0xff]
    %v136 = vld [vmem:[#allocation7 + $0x8] sm:$0xff]
    %v137 = vld [vmem:[#allocation7 + $0x10] sm:$0xff]
    %v138 = vld [vmem:[#allocation7 + $0x18] sm:$0xff]
    %v139 = vld [vmem:[%s6] sm:$0x1]
    %v141 = vlaneseq
    %v142 = vshrl.u32 %v141, 7
    %v143 = vsub.s32 0, %v142
    %v144 = vrot.slane %v139, %v143
    %vm146 = vcmask 261120
    %v148 = vsel %vm146, %v133, 0
    %v151 = vsel %vm146, %v134, 0
    %153 = vmatprep.subr.mxu0 0.0
    %154 = vmatpush1.msra.mxu0 0.0
    %155 = vmatprep.subr.mxu0 0.0
    %156 = vmatpush1.msra.mxu0 0.0
    %157 = vmatprep.subr.mxu0 0.0
    %158 = vmatpush1.msra.mxu0 0.0
    %159 = vmatprep.subr.mxu0 0.0
    %160 = vmatpush1.msra.mxu0 0.0
    %161 = vmatprep.subr.mxu0 0.0
    %162 = vmatpush1.msra.mxu0 0.0
    %163 = vmatprep.subr.mxu0 0.0
    %164 = vmatpush1.msra.mxu0 0.0
    %165 = vmatprep.subr.mxu0 0.0
    %166 = vmatpush1.msra.mxu0 0.0
    %167 = vmatprep.subr.mxu0 0.0
    %168 = vmatpush1.msra.mxu0 0.0
    %169 = vmatprep.subr.mxu0 0.0
    %170 = vmatpush1.msra.mxu0 0.0
    %171 = vmatprep.subr.mxu0 0.0
    %172 = vmatpush1.msra.mxu0 0.0
    %173 = vmatprep.subr.mxu0 0.0
    %174 = vmatpush1.msra.mxu0 0.0
    %175 = vmatprep.subr.mxu0 0.0
    %176 = vmatpush1.msra.mxu0 0.0
    %177 = vmatprep.subr.mxu0 0.0
    %178 = vmatpush1.msra.mxu0 %v138
    %179 = vmatprep.subr.mxu0 0.0
    %180 = vmatpush1.msra.mxu0 %v137
    %181 = vmatprep.subr.mxu0 0.0
    %182 = vmatpush1.msra.mxu0 %v136
    %183 = vmatprep.subr.mxu0 0.0
    %184 = vmatpush1.msra.mxu0 %v135
    %185 = vmatprep.subr.mxu0 0.0
    %186 = vmatpush2.msra.mxu0 0.0
    %187 = vmatprep.subr.mxu0 0.0
    %188 = vmatpush2.msra.mxu0 0.0
    %189 = vmatprep.subr.mxu0 0.0
    %190 = vmatpush2.msra.mxu0 0.0
    %191 = vmatprep.subr.mxu0 0.0
    %192 = vmatpush2.msra.mxu0 0.0
    %193 = vmatprep.subr.mxu0 0.0
    %194 = vmatpush2.msra.mxu0 0.0
    %195 = vmatprep.subr.mxu0 0.0
    %196 = vmatpush2.msra.mxu0 0.0
    %197 = vmatprep.subr.mxu0 0.0
    %198 = vmatpush2.msra.mxu0 0.0
    %199 = vmatprep.subr.mxu0 0.0
    %200 = vmatpush2.msra.mxu0 0.0
    %201 = vmatprep.subr.mxu0 0.0
    %202 = vmatpush2.msra.mxu0 0.0
    %203 = vmatprep.subr.mxu0 0.0
    %204 = vmatpush2.msra.mxu0 0.0
    %205 = vmatprep.subr.mxu0 0.0
    %206 = vmatpush2.msra.mxu0 0.0
    %207 = vmatprep.subr.mxu0 0.0
    %208 = vmatpush2.msra.mxu0 0.0
    %209 = vmatprep.subr.mxu0 0.0
    %210 = vmatpush2.msra.mxu0 0.0
    %211 = vmatprep.subr.mxu0 0.0
    %212 = vmatpush2.msra.mxu0 0.0
    %213 = vmatprep.subr.mxu0 0.0
    %214 = vmatpush2.msra.mxu0 0.0
    %215 = vmatprep.subr.mxu0 0.0
    %216 = vmatpush2.msra.mxu0 0.0
    %217 = vmatprep.mubr.f32.mxu0 0.0
    %218 = vmatmul.mubr.f32.gmra.mxu0 %v148
    %v219 = vpop.f32.mrf.mxu0
    %v220 = vadd.f32 %v144, %v219
    %v221 = vpop.f32.mrf.mxu0
    %222 = vmatprep.mubr.f32.mxu0 0.0
    %223 = vmatmul.mubr.f32.gmra.mxu0 %v151
    %v224 = vpop.f32.mrf.mxu0
    %v225 = vadd.f32 %v144, %v224
    %v226 = vpop.f32.mrf.mxu0
    %227 = vdwg.mxu0
    %v228 = vld [vmem:[#allocation4] sm:$0xff]
    %v229 = vld [vmem:[#allocation4 + $0x8] sm:$0xff]
    %v230 = vld [vmem:[#allocation9] sm:$0xff]
    %v231 = vld [vmem:[#allocation9 + $0x8] sm:$0xff]
    %v232 = vld [vmem:[#allocation9 + $0x10] sm:$0xff]
    %v233 = vld [vmem:[#allocation9 + $0x18] sm:$0xff]
    %v234 = vld [vmem:[%s7] sm:$0x1]
    %v236 = vlaneseq
    %v237 = vshrl.u32 %v236, 7
    %v238 = vsub.s32 0, %v237
    %v239 = vrot.slane %v234, %v238
    %v242 = vsel %vm146, %v228, 0
    %v245 = vsel %vm146, %v229, 0
    %247 = vmatprep.subr.mxu0 0.0
    %248 = vmatpush1.msra.mxu0 0.0
    %249 = vmatprep.subr.mxu0 0.0
    %250 = vmatpush1.msra.mxu0 0.0
    %251 = vmatprep.subr.mxu0 0.0
    %252 = vmatpush1.msra.mxu0 0.0
    %253 = vmatprep.subr.mxu0 0.0
    %254 = vmatpush1.msra.mxu0 0.0
    %255 = vmatprep.subr.mxu0 0.0
    %256 = vmatpush1.msra.mxu0 0.0
    %257 = vmatprep.subr.mxu0 0.0
    %258 = vmatpush1.msra.mxu0 0.0
    %259 = vmatprep.subr.mxu0 0.0
    %260 = vmatpush1.msra.mxu0 0.0
    %261 = vmatprep.subr.mxu0 0.0
    %262 = vmatpush1.msra.mxu0 0.0
    %263 = vmatprep.subr.mxu0 0.0
    %264 = vmatpush1.msra.mxu0 0.0
    %265 = vmatprep.subr.mxu0 0.0
    %266 = vmatpush1.msra.mxu0 0.0
    %267 = vmatprep.subr.mxu0 0.0
    %268 = vmatpush1.msra.mxu0 0.0
    %269 = vmatprep.subr.mxu0 0.0
    %270 = vmatpush1.msra.mxu0 0.0
    %271 = vmatprep.subr.mxu0 0.0
    %272 = vmatpush1.msra.mxu0 %v233
    %273 = vmatprep.subr.mxu0 0.0
    %274 = vmatpush1.msra.mxu0 %v232
    %275 = vmatprep.subr.mxu0 0.0
    %276 = vmatpush1.msra.mxu0 %v231
    %277 = vmatprep.subr.mxu0 0.0
    %278 = vmatpush1.msra.mxu0 %v230
    %279 = vmatprep.subr.mxu0 0.0
    %280 = vmatpush2.msra.mxu0 0.0
    %281 = vmatprep.subr.mxu0 0.0
    %282 = vmatpush2.msra.mxu0 0.0
    %283 = vmatprep.subr.mxu0 0.0
    %284 = vmatpush2.msra.mxu0 0.0
    %285 = vmatprep.subr.mxu0 0.0
    %286 = vmatpush2.msra.mxu0 0.0
    %287 = vmatprep.subr.mxu0 0.0
    %288 = vmatpush2.msra.mxu0 0.0
    %289 = vmatprep.subr.mxu0 0.0
    %290 = vmatpush2.msra.mxu0 0.0
    %291 = vmatprep.subr.mxu0 0.0
    %292 = vmatpush2.msra.mxu0 0.0
    %293 = vmatprep.subr.mxu0 0.0
    %294 = vmatpush2.msra.mxu0 0.0
    %295 = vmatprep.subr.mxu0 0.0
    %296 = vmatpush2.msra.mxu0 0.0
    %297 = vmatprep.subr.mxu0 0.0
    %298 = vmatpush2.msra.mxu0 0.0
    %299 = vmatprep.subr.mxu0 0.0
    %300 = vmatpush2.msra.mxu0 0.0
    %301 = vmatprep.subr.mxu0 0.0
    %302 = vmatpush2.msra.mxu0 0.0
    %303 = vmatprep.subr.mxu0 0.0
    %304 = vmatpush2.msra.mxu0 0.0
    %305 = vmatprep.subr.mxu0 0.0
    %306 = vmatpush2.msra.mxu0 0.0
    %307 = vmatprep.subr.mxu0 0.0
    %308 = vmatpush2.msra.mxu0 0.0
    %309 = vmatprep.subr.mxu0 0.0
    %310 = vmatpush2.msra.mxu0 0.0
    %311 = vmatprep.mubr.f32.mxu0 0.0
    %312 = vmatmul.mubr.f32.gmra.mxu0 %v242
    %v313 = vpop.f32.mrf.mxu0
    %v314 = vadd.f32 %v239, %v313
    %v315 = vpop.f32.mrf.mxu0
    %316 = vmatprep.mubr.f32.mxu0 0.0
    %317 = vmatmul.mubr.f32.gmra.mxu0 %v245
    %v318 = vpop.f32.mrf.mxu0
    %v319 = vadd.f32 %v239, %v318
    %v320 = vpop.f32.mrf.mxu0
    %321 = vdwg.mxu0
    %v322 = vld [vmem:[#allocation6] sm:$0xff]
    %v323 = vld [vmem:[#allocation6 + $0x8] sm:$0xff]
    %v324 = vld [vmem:[#allocation10] sm:$0xff]
    %v325 = vld [vmem:[#allocation10 + $0x8] sm:$0xff]
    %v326 = vld [vmem:[#allocation10 + $0x10] sm:$0xff]
    %v327 = vld [vmem:[#allocation10 + $0x18] sm:$0xff]
    %v328 = vld [vmem:[%s8] sm:$0x1]
    %v330 = vlaneseq
    %v331 = vshrl.u32 %v330, 7
    %v332 = vsub.s32 0, %v331
    %v333 = vrot.slane %v328, %v332
    %v336 = vsel %vm146, %v322, 0
    %v339 = vsel %vm146, %v323, 0
    %341 = vmatprep.subr.mxu0 0.0
    %342 = vmatpush1.msra.mxu0 0.0
    %343 = vmatprep.subr.mxu0 0.0
    %344 = vmatpush1.msra.mxu0 0.0
    %345 = vmatprep.subr.mxu0 0.0
    %346 = vmatpush1.msra.mxu0 0.0
    %347 = vmatprep.subr.mxu0 0.0
    %348 = vmatpush1.msra.mxu0 0.0
    %349 = vmatprep.subr.mxu0 0.0
    %350 = vmatpush1.msra.mxu0 0.0
    %351 = vmatprep.subr.mxu0 0.0
    %352 = vmatpush1.msra.mxu0 0.0
    %353 = vmatprep.subr.mxu0 0.0
    %354 = vmatpush1.msra.mxu0 0.0
    %355 = vmatprep.subr.mxu0 0.0
    %356 = vmatpush1.msra.mxu0 0.0
    %357 = vmatprep.subr.mxu0 0.0
    %358 = vmatpush1.msra.mxu0 0.0
    %359 = vmatprep.subr.mxu0 0.0
    %360 = vmatpush1.msra.mxu0 0.0
    %361 = vmatprep.subr.mxu0 0.0
    %362 = vmatpush1.msra.mxu0 0.0
    %363 = vmatprep.subr.mxu0 0.0
    %364 = vmatpush1.msra.mxu0 0.0
    %365 = vmatprep.subr.mxu0 0.0
    %366 = vmatpush1.msra.mxu0 %v327
    %367 = vmatprep.subr.mxu0 0.0
    %368 = vmatpush1.msra.mxu0 %v326
    %369 = vmatprep.subr.mxu0 0.0
    %370 = vmatpush1.msra.mxu0 %v325
    %371 = vmatprep.subr.mxu0 0.0
    %372 = vmatpush1.msra.mxu0 %v324
    %373 = vmatprep.subr.mxu0 0.0
    %374 = vmatpush2.msra.mxu0 0.0
    %375 = vmatprep.subr.mxu0 0.0
    %376 = vmatpush2.msra.mxu0 0.0
    %377 = vmatprep.subr.mxu0 0.0
    %378 = vmatpush2.msra.mxu0 0.0
    %379 = vmatprep.subr.mxu0 0.0
    %380 = vmatpush2.msra.mxu0 0.0
    %381 = vmatprep.subr.mxu0 0.0
    %382 = vmatpush2.msra.mxu0 0.0
    %383 = vmatprep.subr.mxu0 0.0
    %384 = vmatpush2.msra.mxu0 0.0
    %385 = vmatprep.subr.mxu0 0.0
    %386 = vmatpush2.msra.mxu0 0.0
    %387 = vmatprep.subr.mxu0 0.0
    %388 = vmatpush2.msra.mxu0 0.0
    %389 = vmatprep.subr.mxu0 0.0
    %390 = vmatpush2.msra.mxu0 0.0
    %391 = vmatprep.subr.mxu0 0.0
    %392 = vmatpush2.msra.mxu0 0.0
    %393 = vmatprep.subr.mxu0 0.0
    %394 = vmatpush2.msra.mxu0 0.0
    %395 = vmatprep.subr.mxu0 0.0
    %396 = vmatpush2.msra.mxu0 0.0
    %397 = vmatprep.subr.mxu0 0.0
    %398 = vmatpush2.msra.mxu0 0.0
    %399 = vmatprep.subr.mxu0 0.0
    %400 = vmatpush2.msra.mxu0 0.0
    %401 = vmatprep.subr.mxu0 0.0
    %402 = vmatpush2.msra.mxu0 0.0
    %403 = vmatprep.subr.mxu0 0.0
    %404 = vmatpush2.msra.mxu0 0.0
    %405 = vmatprep.mubr.f32.mxu0 0.0
    %406 = vmatmul.mubr.f32.gmra.mxu0 %v336
    %v407 = vpop.f32.mrf.mxu0
    %v408 = vadd.f32 %v333, %v407
    %v409 = vpop.f32.mrf.mxu0
    %410 = vmatprep.mubr.f32.mxu0 0.0
    %411 = vmatmul.mubr.f32.gmra.mxu0 %v339
    %v412 = vpop.f32.mrf.mxu0
    %v413 = vadd.f32 %v333, %v412
    %v414 = vpop.f32.mrf.mxu0
    %415 = vdwg.mxu0
    %418 = vrot.lane.b32.xlu0 %v220, 120
    %v419 = vpop.permute.xlu0 %418
    %420 = vrot.lane.b32.xlu0 %v225, 120
    %v421 = vpop.permute.xlu0 %420
    %422 = vrot.lane.b32.xlu0 %v220, 112
    %v423 = vpop.permute.xlu0 %422
    %424 = vrot.lane.b32.xlu0 %v225, 112
    %v425 = vpop.permute.xlu0 %424
    %426 = vrot.lane.b32.xlu0 %v220, 104
    %v427 = vpop.permute.xlu0 %426
    %428 = vrot.lane.b32.xlu0 %v225, 104
    %v429 = vpop.permute.xlu0 %428
    %432 = vrot.lane.b32.xlu0 %v314, 120
    %v433 = vpop.permute.xlu0 %432
    %434 = vrot.lane.b32.xlu0 %v319, 120
    %v435 = vpop.permute.xlu0 %434
    %436 = vrot.lane.b32.xlu0 %v314, 112
    %v437 = vpop.permute.xlu0 %436
    %438 = vrot.lane.b32.xlu0 %v319, 112
    %v439 = vpop.permute.xlu0 %438
    %440 = vrot.lane.b32.xlu0 %v314, 104
    %v441 = vpop.permute.xlu0 %440
    %442 = vrot.lane.b32.xlu0 %v319, 104
    %v443 = vpop.permute.xlu0 %442
    %446 = vrot.lane.b32.xlu0 %v408, 120
    %v447 = vpop.permute.xlu0 %446
    %448 = vrot.lane.b32.xlu0 %v413, 120
    %v449 = vpop.permute.xlu0 %448
    %452 = vrot.lane.b32.xlu0 %v408, 112
    %v453 = vpop.permute.xlu0 %452
    %454 = vrot.lane.b32.xlu0 %v413, 112
    %v455 = vpop.permute.xlu0 %454
    %458 = vrot.lane.b32.xlu0 %v408, 104
    %v459 = vpop.permute.xlu0 %458
    %460 = vrot.lane.b32.xlu0 %v413, 104
    %v461 = vpop.permute.xlu0 %460
    %vm464 = vcmask 64512
    %v465 = vsel %vm464, %v220, 0
    %v467 = vsel %vm464, %v314, 0
    %469 = vmatprep.subr.mxu0 0.0
    %470 = vmatpush1.xpose.msra.mxu0 0.0
    %471 = vmatprep.subr.mxu0 0.0
    %472 = vmatpush1.xpose.msra.mxu0 0.0
    %473 = vmatprep.subr.mxu0 0.0
    %474 = vmatpush1.xpose.msra.mxu0 0.0
    %475 = vmatprep.subr.mxu0 0.0
    %476 = vmatpush1.xpose.msra.mxu0 0.0
    %477 = vmatprep.subr.mxu0 0.0
    %478 = vmatpush1.xpose.msra.mxu0 0.0
    %479 = vmatprep.subr.mxu0 0.0
    %480 = vmatpush1.xpose.msra.mxu0 0.0
    %481 = vmatprep.subr.mxu0 0.0
    %482 = vmatpush1.xpose.msra.mxu0 0.0
    %483 = vmatprep.subr.mxu0 0.0
    %484 = vmatpush1.xpose.msra.mxu0 0.0
    %485 = vmatprep.subr.mxu0 0.0
    %486 = vmatpush1.xpose.msra.mxu0 0.0
    %487 = vmatprep.subr.mxu0 0.0
    %488 = vmatpush1.xpose.msra.mxu0 0.0
    %489 = vmatprep.subr.mxu0 0.0
    %490 = vmatpush1.xpose.msra.mxu0 0.0
    %491 = vmatprep.subr.mxu0 0.0
    %492 = vmatpush1.xpose.msra.mxu0 0.0
    %493 = vmatprep.subr.mxu0 0.0
    %494 = vmatpush1.xpose.msra.mxu0 0.0
    %495 = vmatprep.subr.mxu0 0.0
    %496 = vmatpush1.xpose.msra.mxu0 0.0
    %497 = vmatprep.subr.mxu0 0.0
    %498 = vmatpush1.xpose.msra.mxu0 0.0
    %499 = vmatprep.subr.mxu0 0.0
    %500 = vmatpush1.xpose.msra.mxu0 %v467
    %501 = vmatprep.subr.mxu0 0.0
    %502 = vmatpush2.xpose.msra.mxu0 0.0
    %503 = vmatprep.subr.mxu0 0.0
    %504 = vmatpush2.xpose.msra.mxu0 0.0
    %505 = vmatprep.subr.mxu0 0.0
    %506 = vmatpush2.xpose.msra.mxu0 0.0
    %507 = vmatprep.subr.mxu0 0.0
    %508 = vmatpush2.xpose.msra.mxu0 0.0
    %509 = vmatprep.subr.mxu0 0.0
    %510 = vmatpush2.xpose.msra.mxu0 0.0
    %511 = vmatprep.subr.mxu0 0.0
    %512 = vmatpush2.xpose.msra.mxu0 0.0
    %513 = vmatprep.subr.mxu0 0.0
    %514 = vmatpush2.xpose.msra.mxu0 0.0
    %515 = vmatprep.subr.mxu0 0.0
    %516 = vmatpush2.xpose.msra.mxu0 0.0
    %517 = vmatprep.subr.mxu0 0.0
    %518 = vmatpush2.xpose.msra.mxu0 0.0
    %519 = vmatprep.subr.mxu0 0.0
    %520 = vmatpush2.xpose.msra.mxu0 0.0
    %521 = vmatprep.subr.mxu0 0.0
    %522 = vmatpush2.xpose.msra.mxu0 0.0
    %523 = vmatprep.subr.mxu0 0.0
    %524 = vmatpush2.xpose.msra.mxu0 0.0
    %525 = vmatprep.subr.mxu0 0.0
    %526 = vmatpush2.xpose.msra.mxu0 0.0
    %527 = vmatprep.subr.mxu0 0.0
    %528 = vmatpush2.xpose.msra.mxu0 0.0
    %529 = vmatprep.subr.mxu0 0.0
    %530 = vmatpush2.xpose.msra.mxu0 0.0
    %531 = vmatprep.subr.mxu0 0.0
    %532 = vmatpush2.xpose.msra.mxu0 0.0
    %533 = vmatprep.mubr.f32.mxu0 0.0
    %534 = vmatmul.mubr.f32.gmra.mxu0 %v465
    %v535 = vpop.f32.mrf.mxu0
    %v536 = vadd.f32 0.0, %v535
    %v537 = vpop.f32.mrf.mxu0
    %538 = vdwg.mxu0
    %v539 = vsel %vm464, %v225, 0
    %v541 = vsel %vm464, %v319, 0
    %543 = vmatprep.subr.mxu0 0.0
    %544 = vmatpush1.xpose.msra.mxu0 0.0
    %545 = vmatprep.subr.mxu0 0.0
    %546 = vmatpush1.xpose.msra.mxu0 0.0
    %547 = vmatprep.subr.mxu0 0.0
    %548 = vmatpush1.xpose.msra.mxu0 0.0
    %549 = vmatprep.subr.mxu0 0.0
    %550 = vmatpush1.xpose.msra.mxu0 0.0
    %551 = vmatprep.subr.mxu0 0.0
    %552 = vmatpush1.xpose.msra.mxu0 0.0
    %553 = vmatprep.subr.mxu0 0.0
    %554 = vmatpush1.xpose.msra.mxu0 0.0
    %555 = vmatprep.subr.mxu0 0.0
    %556 = vmatpush1.xpose.msra.mxu0 0.0
    %557 = vmatprep.subr.mxu0 0.0
    %558 = vmatpush1.xpose.msra.mxu0 0.0
    %559 = vmatprep.subr.mxu0 0.0
    %560 = vmatpush1.xpose.msra.mxu0 0.0
    %561 = vmatprep.subr.mxu0 0.0
    %562 = vmatpush1.xpose.msra.mxu0 0.0
    %563 = vmatprep.subr.mxu0 0.0
    %564 = vmatpush1.xpose.msra.mxu0 0.0
    %565 = vmatprep.subr.mxu0 0.0
    %566 = vmatpush1.xpose.msra.mxu0 0.0
    %567 = vmatprep.subr.mxu0 0.0
    %568 = vmatpush1.xpose.msra.mxu0 0.0
    %569 = vmatprep.subr.mxu0 0.0
    %570 = vmatpush1.xpose.msra.mxu0 0.0
    %571 = vmatprep.subr.mxu0 0.0
    %572 = vmatpush1.xpose.msra.mxu0 0.0
    %573 = vmatprep.subr.mxu0 0.0
    %574 = vmatpush1.xpose.msra.mxu0 %v541
    %575 = vmatprep.subr.mxu0 0.0
    %576 = vmatpush2.xpose.msra.mxu0 0.0
    %577 = vmatprep.subr.mxu0 0.0
    %578 = vmatpush2.xpose.msra.mxu0 0.0
    %579 = vmatprep.subr.mxu0 0.0
    %580 = vmatpush2.xpose.msra.mxu0 0.0
    %581 = vmatprep.subr.mxu0 0.0
    %582 = vmatpush2.xpose.msra.mxu0 0.0
    %583 = vmatprep.subr.mxu0 0.0
    %584 = vmatpush2.xpose.msra.mxu0 0.0
    %585 = vmatprep.subr.mxu0 0.0
    %586 = vmatpush2.xpose.msra.mxu0 0.0
    %587 = vmatprep.subr.mxu0 0.0
    %588 = vmatpush2.xpose.msra.mxu0 0.0
    %589 = vmatprep.subr.mxu0 0.0
    %590 = vmatpush2.xpose.msra.mxu0 0.0
    %591 = vmatprep.subr.mxu0 0.0
    %592 = vmatpush2.xpose.msra.mxu0 0.0
    %593 = vmatprep.subr.mxu0 0.0
    %594 = vmatpush2.xpose.msra.mxu0 0.0
    %595 = vmatprep.subr.mxu0 0.0
    %596 = vmatpush2.xpose.msra.mxu0 0.0
    %597 = vmatprep.subr.mxu0 0.0
    %598 = vmatpush2.xpose.msra.mxu0 0.0
    %599 = vmatprep.subr.mxu0 0.0
    %600 = vmatpush2.xpose.msra.mxu0 0.0
    %601 = vmatprep.subr.mxu0 0.0
    %602 = vmatpush2.xpose.msra.mxu0 0.0
    %603 = vmatprep.subr.mxu0 0.0
    %604 = vmatpush2.xpose.msra.mxu0 0.0
    %605 = vmatprep.subr.mxu0 0.0
    %606 = vmatpush2.xpose.msra.mxu0 0.0
    %607 = vmatprep.mubr.f32.mxu0 0.0
    %608 = vmatmul.mubr.f32.gmra.mxu0 %v539
    %v609 = vpop.f32.mrf.mxu0
    %v610 = vadd.f32 0.0, %v609
    %v611 = vpop.f32.mrf.mxu0
    %612 = vdwg.mxu0
    %v613 = vsel %vm464, %v419, 0
    %v615 = vsel %vm464, %v433, 0
    %617 = vmatprep.subr.mxu0 0.0
    %618 = vmatpush1.xpose.msra.mxu0 0.0
    %619 = vmatprep.subr.mxu0 0.0
    %620 = vmatpush1.xpose.msra.mxu0 0.0
    %621 = vmatprep.subr.mxu0 0.0
    %622 = vmatpush1.xpose.msra.mxu0 0.0
    %623 = vmatprep.subr.mxu0 0.0
    %624 = vmatpush1.xpose.msra.mxu0 0.0
    %625 = vmatprep.subr.mxu0 0.0
    %626 = vmatpush1.xpose.msra.mxu0 0.0
    %627 = vmatprep.subr.mxu0 0.0
    %628 = vmatpush1.xpose.msra.mxu0 0.0
    %629 = vmatprep.subr.mxu0 0.0
    %630 = vmatpush1.xpose.msra.mxu0 0.0
    %631 = vmatprep.subr.mxu0 0.0
    %632 = vmatpush1.xpose.msra.mxu0 0.0
    %633 = vmatprep.subr.mxu0 0.0
    %634 = vmatpush1.xpose.msra.mxu0 0.0
    %635 = vmatprep.subr.mxu0 0.0
    %636 = vmatpush1.xpose.msra.mxu0 0.0
    %637 = vmatprep.subr.mxu0 0.0
    %638 = vmatpush1.xpose.msra.mxu0 0.0
    %639 = vmatprep.subr.mxu0 0.0
    %640 = vmatpush1.xpose.msra.mxu0 0.0
    %641 = vmatprep.subr.mxu0 0.0
    %642 = vmatpush1.xpose.msra.mxu0 0.0
    %643 = vmatprep.subr.mxu0 0.0
    %644 = vmatpush1.xpose.msra.mxu0 0.0
    %645 = vmatprep.subr.mxu0 0.0
    %646 = vmatpush1.xpose.msra.mxu0 0.0
    %647 = vmatprep.subr.mxu0 0.0
    %648 = vmatpush1.xpose.msra.mxu0 %v615
    %649 = vmatprep.subr.mxu0 0.0
    %650 = vmatpush2.xpose.msra.mxu0 0.0
    %651 = vmatprep.subr.mxu0 0.0
    %652 = vmatpush2.xpose.msra.mxu0 0.0
    %653 = vmatprep.subr.mxu0 0.0
    %654 = vmatpush2.xpose.msra.mxu0 0.0
    %655 = vmatprep.subr.mxu0 0.0
    %656 = vmatpush2.xpose.msra.mxu0 0.0
    %657 = vmatprep.subr.mxu0 0.0
    %658 = vmatpush2.xpose.msra.mxu0 0.0
    %659 = vmatprep.subr.mxu0 0.0
    %660 = vmatpush2.xpose.msra.mxu0 0.0
    %661 = vmatprep.subr.mxu0 0.0
    %662 = vmatpush2.xpose.msra.mxu0 0.0
    %663 = vmatprep.subr.mxu0 0.0
    %664 = vmatpush2.xpose.msra.mxu0 0.0
    %665 = vmatprep.subr.mxu0 0.0
    %666 = vmatpush2.xpose.msra.mxu0 0.0
    %667 = vmatprep.subr.mxu0 0.0
    %668 = vmatpush2.xpose.msra.mxu0 0.0
    %669 = vmatprep.subr.mxu0 0.0
    %670 = vmatpush2.xpose.msra.mxu0 0.0
    %671 = vmatprep.subr.mxu0 0.0
    %672 = vmatpush2.xpose.msra.mxu0 0.0
    %673 = vmatprep.subr.mxu0 0.0
    %674 = vmatpush2.xpose.msra.mxu0 0.0
    %675 = vmatprep.subr.mxu0 0.0
    %676 = vmatpush2.xpose.msra.mxu0 0.0
    %677 = vmatprep.subr.mxu0 0.0
    %678 = vmatpush2.xpose.msra.mxu0 0.0
    %679 = vmatprep.subr.mxu0 0.0
    %680 = vmatpush2.xpose.msra.mxu0 0.0
    %681 = vmatprep.mubr.f32.mxu0 0.0
    %682 = vmatmul.mubr.f32.gmra.mxu0 %v613
    %v683 = vpop.f32.mrf.mxu0
    %v684 = vadd.f32 0.0, %v683
    %v685 = vpop.f32.mrf.mxu0
    %686 = vdwg.mxu0
    %v687 = vsel %vm464, %v421, 0
    %v689 = vsel %vm464, %v435, 0
    %691 = vmatprep.subr.mxu0 0.0
    %692 = vmatpush1.xpose.msra.mxu0 0.0
    %693 = vmatprep.subr.mxu0 0.0
    %694 = vmatpush1.xpose.msra.mxu0 0.0
    %695 = vmatprep.subr.mxu0 0.0
    %696 = vmatpush1.xpose.msra.mxu0 0.0
    %697 = vmatprep.subr.mxu0 0.0
    %698 = vmatpush1.xpose.msra.mxu0 0.0
    %699 = vmatprep.subr.mxu0 0.0
    %700 = vmatpush1.xpose.msra.mxu0 0.0
    %701 = vmatprep.subr.mxu0 0.0
    %702 = vmatpush1.xpose.msra.mxu0 0.0
    %703 = vmatprep.subr.mxu0 0.0
    %704 = vmatpush1.xpose.msra.mxu0 0.0
    %705 = vmatprep.subr.mxu0 0.0
    %706 = vmatpush1.xpose.msra.mxu0 0.0
    %707 = vmatprep.subr.mxu0 0.0
    %708 = vmatpush1.xpose.msra.mxu0 0.0
    %709 = vmatprep.subr.mxu0 0.0
    %710 = vmatpush1.xpose.msra.mxu0 0.0
    %711 = vmatprep.subr.mxu0 0.0
    %712 = vmatpush1.xpose.msra.mxu0 0.0
    %713 = vmatprep.subr.mxu0 0.0
    %714 = vmatpush1.xpose.msra.mxu0 0.0
    %715 = vmatprep.subr.mxu0 0.0
    %716 = vmatpush1.xpose.msra.mxu0 0.0
    %717 = vmatprep.subr.mxu0 0.0
    %718 = vmatpush1.xpose.msra.mxu0 0.0
    %719 = vmatprep.subr.mxu0 0.0
    %720 = vmatpush1.xpose.msra.mxu0 0.0
    %721 = vmatprep.subr.mxu0 0.0
    %722 = vmatpush1.xpose.msra.mxu0 %v689
    %723 = vmatprep.subr.mxu0 0.0
    %724 = vmatpush2.xpose.msra.mxu0 0.0
    %725 = vmatprep.subr.mxu0 0.0
    %726 = vmatpush2.xpose.msra.mxu0 0.0
    %727 = vmatprep.subr.mxu0 0.0
    %728 = vmatpush2.xpose.msra.mxu0 0.0
    %729 = vmatprep.subr.mxu0 0.0
    %730 = vmatpush2.xpose.msra.mxu0 0.0
    %731 = vmatprep.subr.mxu0 0.0
    %732 = vmatpush2.xpose.msra.mxu0 0.0
    %733 = vmatprep.subr.mxu0 0.0
    %734 = vmatpush2.xpose.msra.mxu0 0.0
    %735 = vmatprep.subr.mxu0 0.0
    %736 = vmatpush2.xpose.msra.mxu0 0.0
    %737 = vmatprep.subr.mxu0 0.0
    %738 = vmatpush2.xpose.msra.mxu0 0.0
    %739 = vmatprep.subr.mxu0 0.0
    %740 = vmatpush2.xpose.msra.mxu0 0.0
    %741 = vmatprep.subr.mxu0 0.0
    %742 = vmatpush2.xpose.msra.mxu0 0.0
    %743 = vmatprep.subr.mxu0 0.0
    %744 = vmatpush2.xpose.msra.mxu0 0.0
    %745 = vmatprep.subr.mxu0 0.0
    %746 = vmatpush2.xpose.msra.mxu0 0.0
    %747 = vmatprep.subr.mxu0 0.0
    %748 = vmatpush2.xpose.msra.mxu0 0.0
    %749 = vmatprep.subr.mxu0 0.0
    %750 = vmatpush2.xpose.msra.mxu0 0.0
    %751 = vmatprep.subr.mxu0 0.0
    %752 = vmatpush2.xpose.msra.mxu0 0.0
    %753 = vmatprep.subr.mxu0 0.0
    %754 = vmatpush2.xpose.msra.mxu0 0.0
    %755 = vmatprep.mubr.f32.mxu0 0.0
    %756 = vmatmul.mubr.f32.gmra.mxu0 %v687
    %v757 = vpop.f32.mrf.mxu0
    %v758 = vadd.f32 0.0, %v757
    %v759 = vpop.f32.mrf.mxu0
    %760 = vdwg.mxu0
    %v761 = vsel %vm464, %v423, 0
    %v763 = vsel %vm464, %v437, 0
    %765 = vmatprep.subr.mxu0 0.0
    %766 = vmatpush1.xpose.msra.mxu0 0.0
    %767 = vmatprep.subr.mxu0 0.0
    %768 = vmatpush1.xpose.msra.mxu0 0.0
    %769 = vmatprep.subr.mxu0 0.0
    %770 = vmatpush1.xpose.msra.mxu0 0.0
    %771 = vmatprep.subr.mxu0 0.0
    %772 = vmatpush1.xpose.msra.mxu0 0.0
    %773 = vmatprep.subr.mxu0 0.0
    %774 = vmatpush1.xpose.msra.mxu0 0.0
    %775 = vmatprep.subr.mxu0 0.0
    %776 = vmatpush1.xpose.msra.mxu0 0.0
    %777 = vmatprep.subr.mxu0 0.0
    %778 = vmatpush1.xpose.msra.mxu0 0.0
    %779 = vmatprep.subr.mxu0 0.0
    %780 = vmatpush1.xpose.msra.mxu0 0.0
    %781 = vmatprep.subr.mxu0 0.0
    %782 = vmatpush1.xpose.msra.mxu0 0.0
    %783 = vmatprep.subr.mxu0 0.0
    %784 = vmatpush1.xpose.msra.mxu0 0.0
    %785 = vmatprep.subr.mxu0 0.0
    %786 = vmatpush1.xpose.msra.mxu0 0.0
    %787 = vmatprep.subr.mxu0 0.0
    %788 = vmatpush1.xpose.msra.mxu0 0.0
    %789 = vmatprep.subr.mxu0 0.0
    %790 = vmatpush1.xpose.msra.mxu0 0.0
    %791 = vmatprep.subr.mxu0 0.0
    %792 = vmatpush1.xpose.msra.mxu0 0.0
    %793 = vmatprep.subr.mxu0 0.0
    %794 = vmatpush1.xpose.msra.mxu0 0.0
    %795 = vmatprep.subr.mxu0 0.0
    %796 = vmatpush1.xpose.msra.mxu0 %v763
    %797 = vmatprep.subr.mxu0 0.0
    %798 = vmatpush2.xpose.msra.mxu0 0.0
    %799 = vmatprep.subr.mxu0 0.0
    %800 = vmatpush2.xpose.msra.mxu0 0.0
    %801 = vmatprep.subr.mxu0 0.0
    %802 = vmatpush2.xpose.msra.mxu0 0.0
    %803 = vmatprep.subr.mxu0 0.0
    %804 = vmatpush2.xpose.msra.mxu0 0.0
    %805 = vmatprep.subr.mxu0 0.0
    %806 = vmatpush2.xpose.msra.mxu0 0.0
    %807 = vmatprep.subr.mxu0 0.0
    %808 = vmatpush2.xpose.msra.mxu0 0.0
    %809 = vmatprep.subr.mxu0 0.0
    %810 = vmatpush2.xpose.msra.mxu0 0.0
    %811 = vmatprep.subr.mxu0 0.0
    %812 = vmatpush2.xpose.msra.mxu0 0.0
    %813 = vmatprep.subr.mxu0 0.0
    %814 = vmatpush2.xpose.msra.mxu0 0.0
    %815 = vmatprep.subr.mxu0 0.0
    %816 = vmatpush2.xpose.msra.mxu0 0.0
    %817 = vmatprep.subr.mxu0 0.0
    %818 = vmatpush2.xpose.msra.mxu0 0.0
    %819 = vmatprep.subr.mxu0 0.0
    %820 = vmatpush2.xpose.msra.mxu0 0.0
    %821 = vmatprep.subr.mxu0 0.0
    %822 = vmatpush2.xpose.msra.mxu0 0.0
    %823 = vmatprep.subr.mxu0 0.0
    %824 = vmatpush2.xpose.msra.mxu0 0.0
    %825 = vmatprep.subr.mxu0 0.0
    %826 = vmatpush2.xpose.msra.mxu0 0.0
    %827 = vmatprep.subr.mxu0 0.0
    %828 = vmatpush2.xpose.msra.mxu0 0.0
    %829 = vmatprep.mubr.f32.mxu0 0.0
    %830 = vmatmul.mubr.f32.gmra.mxu0 %v761
    %v831 = vpop.f32.mrf.mxu0
    %v832 = vadd.f32 0.0, %v831
    %v833 = vpop.f32.mrf.mxu0
    %834 = vdwg.mxu0
    %v835 = vsel %vm464, %v425, 0
    %v837 = vsel %vm464, %v439, 0
    %839 = vmatprep.subr.mxu0 0.0
    %840 = vmatpush1.xpose.msra.mxu0 0.0
    %841 = vmatprep.subr.mxu0 0.0
    %842 = vmatpush1.xpose.msra.mxu0 0.0
    %843 = vmatprep.subr.mxu0 0.0
    %844 = vmatpush1.xpose.msra.mxu0 0.0
    %845 = vmatprep.subr.mxu0 0.0
    %846 = vmatpush1.xpose.msra.mxu0 0.0
    %847 = vmatprep.subr.mxu0 0.0
    %848 = vmatpush1.xpose.msra.mxu0 0.0
    %849 = vmatprep.subr.mxu0 0.0
    %850 = vmatpush1.xpose.msra.mxu0 0.0
    %851 = vmatprep.subr.mxu0 0.0
    %852 = vmatpush1.xpose.msra.mxu0 0.0
    %853 = vmatprep.subr.mxu0 0.0
    %854 = vmatpush1.xpose.msra.mxu0 0.0
    %855 = vmatprep.subr.mxu0 0.0
    %856 = vmatpush1.xpose.msra.mxu0 0.0
    %857 = vmatprep.subr.mxu0 0.0
    %858 = vmatpush1.xpose.msra.mxu0 0.0
    %859 = vmatprep.subr.mxu0 0.0
    %860 = vmatpush1.xpose.msra.mxu0 0.0
    %861 = vmatprep.subr.mxu0 0.0
    %862 = vmatpush1.xpose.msra.mxu0 0.0
    %863 = vmatprep.subr.mxu0 0.0
    %864 = vmatpush1.xpose.msra.mxu0 0.0
    %865 = vmatprep.subr.mxu0 0.0
    %866 = vmatpush1.xpose.msra.mxu0 0.0
    %867 = vmatprep.subr.mxu0 0.0
    %868 = vmatpush1.xpose.msra.mxu0 0.0
    %869 = vmatprep.subr.mxu0 0.0
    %870 = vmatpush1.xpose.msra.mxu0 %v837
    %871 = vmatprep.subr.mxu0 0.0
    %872 = vmatpush2.xpose.msra.mxu0 0.0
    %873 = vmatprep.subr.mxu0 0.0
    %874 = vmatpush2.xpose.msra.mxu0 0.0
    %875 = vmatprep.subr.mxu0 0.0
    %876 = vmatpush2.xpose.msra.mxu0 0.0
    %877 = vmatprep.subr.mxu0 0.0
    %878 = vmatpush2.xpose.msra.mxu0 0.0
    %879 = vmatprep.subr.mxu0 0.0
    %880 = vmatpush2.xpose.msra.mxu0 0.0
    %881 = vmatprep.subr.mxu0 0.0
    %882 = vmatpush2.xpose.msra.mxu0 0.0
    %883 = vmatprep.subr.mxu0 0.0
    %884 = vmatpush2.xpose.msra.mxu0 0.0
    %885 = vmatprep.subr.mxu0 0.0
    %886 = vmatpush2.xpose.msra.mxu0 0.0
    %887 = vmatprep.subr.mxu0 0.0
    %888 = vmatpush2.xpose.msra.mxu0 0.0
    %889 = vmatprep.subr.mxu0 0.0
    %890 = vmatpush2.xpose.msra.mxu0 0.0
    %891 = vmatprep.subr.mxu0 0.0
    %892 = vmatpush2.xpose.msra.mxu0 0.0
    %893 = vmatprep.subr.mxu0 0.0
    %894 = vmatpush2.xpose.msra.mxu0 0.0
    %895 = vmatprep.subr.mxu0 0.0
    %896 = vmatpush2.xpose.msra.mxu0 0.0
    %897 = vmatprep.subr.mxu0 0.0
    %898 = vmatpush2.xpose.msra.mxu0 0.0
    %899 = vmatprep.subr.mxu0 0.0
    %900 = vmatpush2.xpose.msra.mxu0 0.0
    %901 = vmatprep.subr.mxu0 0.0
    %902 = vmatpush2.xpose.msra.mxu0 0.0
    %903 = vmatprep.mubr.f32.mxu0 0.0
    %904 = vmatmul.mubr.f32.gmra.mxu0 %v835
    %v905 = vpop.f32.mrf.mxu0
    %v906 = vadd.f32 0.0, %v905
    %v907 = vpop.f32.mrf.mxu0
    %908 = vdwg.mxu0
    %v909 = vsel %vm464, %v427, 0
    %v911 = vsel %vm464, %v441, 0
    %913 = vmatprep.subr.mxu0 0.0
    %914 = vmatpush1.xpose.msra.mxu0 0.0
    %915 = vmatprep.subr.mxu0 0.0
    %916 = vmatpush1.xpose.msra.mxu0 0.0
    %917 = vmatprep.subr.mxu0 0.0
    %918 = vmatpush1.xpose.msra.mxu0 0.0
    %919 = vmatprep.subr.mxu0 0.0
    %920 = vmatpush1.xpose.msra.mxu0 0.0
    %921 = vmatprep.subr.mxu0 0.0
    %922 = vmatpush1.xpose.msra.mxu0 0.0
    %923 = vmatprep.subr.mxu0 0.0
    %924 = vmatpush1.xpose.msra.mxu0 0.0
    %925 = vmatprep.subr.mxu0 0.0
    %926 = vmatpush1.xpose.msra.mxu0 0.0
    %927 = vmatprep.subr.mxu0 0.0
    %928 = vmatpush1.xpose.msra.mxu0 0.0
    %929 = vmatprep.subr.mxu0 0.0
    %930 = vmatpush1.xpose.msra.mxu0 0.0
    %931 = vmatprep.subr.mxu0 0.0
    %932 = vmatpush1.xpose.msra.mxu0 0.0
    %933 = vmatprep.subr.mxu0 0.0
    %934 = vmatpush1.xpose.msra.mxu0 0.0
    %935 = vmatprep.subr.mxu0 0.0
    %936 = vmatpush1.xpose.msra.mxu0 0.0
    %937 = vmatprep.subr.mxu0 0.0
    %938 = vmatpush1.xpose.msra.mxu0 0.0
    %939 = vmatprep.subr.mxu0 0.0
    %940 = vmatpush1.xpose.msra.mxu0 0.0
    %941 = vmatprep.subr.mxu0 0.0
    %942 = vmatpush1.xpose.msra.mxu0 0.0
    %943 = vmatprep.subr.mxu0 0.0
    %944 = vmatpush1.xpose.msra.mxu0 %v911
    %945 = vmatprep.subr.mxu0 0.0
    %946 = vmatpush2.xpose.msra.mxu0 0.0
    %947 = vmatprep.subr.mxu0 0.0
    %948 = vmatpush2.xpose.msra.mxu0 0.0
    %949 = vmatprep.subr.mxu0 0.0
    %950 = vmatpush2.xpose.msra.mxu0 0.0
    %951 = vmatprep.subr.mxu0 0.0
    %952 = vmatpush2.xpose.msra.mxu0 0.0
    %953 = vmatprep.subr.mxu0 0.0
    %954 = vmatpush2.xpose.msra.mxu0 0.0
    %955 = vmatprep.subr.mxu0 0.0
    %956 = vmatpush2.xpose.msra.mxu0 0.0
    %957 = vmatprep.subr.mxu0 0.0
    %958 = vmatpush2.xpose.msra.mxu0 0.0
    %959 = vmatprep.subr.mxu0 0.0
    %960 = vmatpush2.xpose.msra.mxu0 0.0
    %961 = vmatprep.subr.mxu0 0.0
    %962 = vmatpush2.xpose.msra.mxu0 0.0
    %963 = vmatprep.subr.mxu0 0.0
    %964 = vmatpush2.xpose.msra.mxu0 0.0
    %965 = vmatprep.subr.mxu0 0.0
    %966 = vmatpush2.xpose.msra.mxu0 0.0
    %967 = vmatprep.subr.mxu0 0.0
    %968 = vmatpush2.xpose.msra.mxu0 0.0
    %969 = vmatprep.subr.mxu0 0.0
    %970 = vmatpush2.xpose.msra.mxu0 0.0
    %971 = vmatprep.subr.mxu0 0.0
    %972 = vmatpush2.xpose.msra.mxu0 0.0
    %973 = vmatprep.subr.mxu0 0.0
    %974 = vmatpush2.xpose.msra.mxu0 0.0
    %975 = vmatprep.subr.mxu0 0.0
    %976 = vmatpush2.xpose.msra.mxu0 0.0
    %977 = vmatprep.mubr.f32.mxu0 0.0
    %978 = vmatmul.mubr.f32.gmra.mxu0 %v909
    %v979 = vpop.f32.mrf.mxu0
    %v980 = vadd.f32 0.0, %v979
    %v981 = vpop.f32.mrf.mxu0
    %982 = vdwg.mxu0
    %v983 = vsel %vm464, %v429, 0
    %v985 = vsel %vm464, %v443, 0
    %987 = vmatprep.subr.mxu0 0.0
    %988 = vmatpush1.xpose.msra.mxu0 0.0
    %989 = vmatprep.subr.mxu0 0.0
    %990 = vmatpush1.xpose.msra.mxu0 0.0
    %991 = vmatprep.subr.mxu0 0.0
    %992 = vmatpush1.xpose.msra.mxu0 0.0
    %993 = vmatprep.subr.mxu0 0.0
    %994 = vmatpush1.xpose.msra.mxu0 0.0
    %995 = vmatprep.subr.mxu0 0.0
    %996 = vmatpush1.xpose.msra.mxu0 0.0
    %997 = vmatprep.subr.mxu0 0.0
    %998 = vmatpush1.xpose.msra.mxu0 0.0
    %999 = vmatprep.subr.mxu0 0.0
    %1000 = vmatpush1.xpose.msra.mxu0 0.0
    %1001 = vmatprep.subr.mxu0 0.0
    %1002 = vmatpush1.xpose.msra.mxu0 0.0
    %1003 = vmatprep.subr.mxu0 0.0
    %1004 = vmatpush1.xpose.msra.mxu0 0.0
    %1005 = vmatprep.subr.mxu0 0.0
    %1006 = vmatpush1.xpose.msra.mxu0 0.0
    %1007 = vmatprep.subr.mxu0 0.0
    %1008 = vmatpush1.xpose.msra.mxu0 0.0
    %1009 = vmatprep.subr.mxu0 0.0
    %1010 = vmatpush1.xpose.msra.mxu0 0.0
    %1011 = vmatprep.subr.mxu0 0.0
    %1012 = vmatpush1.xpose.msra.mxu0 0.0
    %1013 = vmatprep.subr.mxu0 0.0
    %1014 = vmatpush1.xpose.msra.mxu0 0.0
    %1015 = vmatprep.subr.mxu0 0.0
    %1016 = vmatpush1.xpose.msra.mxu0 0.0
    %1017 = vmatprep.subr.mxu0 0.0
    %1018 = vmatpush1.xpose.msra.mxu0 %v985
    %1019 = vmatprep.subr.mxu0 0.0
    %1020 = vmatpush2.xpose.msra.mxu0 0.0
    %1021 = vmatprep.subr.mxu0 0.0
    %1022 = vmatpush2.xpose.msra.mxu0 0.0
    %1023 = vmatprep.subr.mxu0 0.0
    %1024 = vmatpush2.xpose.msra.mxu0 0.0
    %1025 = vmatprep.subr.mxu0 0.0
    %1026 = vmatpush2.xpose.msra.mxu0 0.0
    %1027 = vmatprep.subr.mxu0 0.0
    %1028 = vmatpush2.xpose.msra.mxu0 0.0
    %1029 = vmatprep.subr.mxu0 0.0
    %1030 = vmatpush2.xpose.msra.mxu0 0.0
    %1031 = vmatprep.subr.mxu0 0.0
    %1032 = vmatpush2.xpose.msra.mxu0 0.0
    %1033 = vmatprep.subr.mxu0 0.0
    %1034 = vmatpush2.xpose.msra.mxu0 0.0
    %1035 = vmatprep.subr.mxu0 0.0
    %1036 = vmatpush2.xpose.msra.mxu0 0.0
    %1037 = vmatprep.subr.mxu0 0.0
    %1038 = vmatpush2.xpose.msra.mxu0 0.0
    %1039 = vmatprep.subr.mxu0 0.0
    %1040 = vmatpush2.xpose.msra.mxu0 0.0
    %1041 = vmatprep.subr.mxu0 0.0
    %1042 = vmatpush2.xpose.msra.mxu0 0.0
    %1043 = vmatprep.subr.mxu0 0.0
    %1044 = vmatpush2.xpose.msra.mxu0 0.0
    %1045 = vmatprep.subr.mxu0 0.0
    %1046 = vmatpush2.xpose.msra.mxu0 0.0
    %1047 = vmatprep.subr.mxu0 0.0
    %1048 = vmatpush2.xpose.msra.mxu0 0.0
    %1049 = vmatprep.subr.mxu0 0.0
    %1050 = vmatpush2.xpose.msra.mxu0 0.0
    %1051 = vmatprep.mubr.f32.mxu0 0.0
    %1052 = vmatmul.mubr.f32.gmra.mxu0 %v983
    %v1053 = vpop.f32.mrf.mxu0
    %v1054 = vadd.f32 0.0, %v1053
    %v1055 = vpop.f32.mrf.mxu0
    %1056 = vdwg.mxu0
    %v1057 = vmul.f32 %v536, 0.35355338
    %v1058 = vmul.f32 %v610, 0.35355338
    %v1059 = vmul.f32 %v684, 0.35355338
    %v1060 = vmul.f32 %v758, 0.35355338
    %v1061 = vmul.f32 %v832, 0.35355338
    %v1062 = vmul.f32 %v906, 0.35355338
    %v1063 = vmul.f32 %v980, 0.35355338
    %v1064 = vmul.f32 %v1054, 0.35355338
    %v1065 = vsel %vm464, %v1057, -inf
    %1066 = vmax.xlane.f32.xlu0 %v1065
    %v1067 = vpop.xlane.xlu0 %1066
    %v1068 = vsel %vm464, %v1058, -inf
    %1069 = vmax.xlane.f32.xlu0 %v1068
    %v1070 = vpop.xlane.xlu0 %1069
    %v1071 = vsel %vm464, %v1059, -inf
    %1072 = vmax.xlane.f32.xlu0 %v1071
    %v1073 = vpop.xlane.xlu0 %1072
    %v1074 = vsel %vm464, %v1060, -inf
    %1075 = vmax.xlane.f32.xlu0 %v1074
    %v1076 = vpop.xlane.xlu0 %1075
    %v1077 = vsel %vm464, %v1061, -inf
    %1078 = vmax.xlane.f32.xlu0 %v1077
    %v1079 = vpop.xlane.xlu0 %1078
    %v1080 = vsel %vm464, %v1062, -inf
    %1081 = vmax.xlane.f32.xlu0 %v1080
    %v1082 = vpop.xlane.xlu0 %1081
    %v1083 = vsel %vm464, %v1063, -inf
    %1084 = vmax.xlane.f32.xlu0 %v1083
    %v1085 = vpop.xlane.xlu0 %1084
    %v1086 = vsel %vm464, %v1064, -inf
    %1087 = vmax.xlane.f32.xlu0 %v1086
    %v1088 = vpop.xlane.xlu0 %1087
    %v1089 = vsub.f32 %v1057, %v1067
    %v1090 = vsub.f32 %v1058, %v1070
    %v1091 = vsub.f32 %v1059, %v1073
    %v1092 = vsub.f32 %v1060, %v1076
    %v1093 = vsub.f32 %v1061, %v1079
    %v1094 = vsub.f32 %v1062, %v1082
    %v1095 = vsub.f32 %v1063, %v1085
    %v1096 = vsub.f32 %v1064, %v1088
    %v1097 = vmul.f32 %v1089, 1.442695
    %v1098 = vpow.pop %v1097
    %v1099 = vmul.f32 %v1090, 1.442695
    %v1100 = vpow.pop %v1099
    %v1101 = vmul.f32 %v1091, 1.442695
    %v1102 = vpow.pop %v1101
    %v1103 = vmul.f32 %v1092, 1.442695
    %v1104 = vpow.pop %v1103
    %v1105 = vmul.f32 %v1093, 1.442695
    %v1106 = vpow.pop %v1105
    %v1107 = vmul.f32 %v1094, 1.442695
    %v1108 = vpow.pop %v1107
    %v1109 = vmul.f32 %v1095, 1.442695
    %v1110 = vpow.pop %v1109
    %v1111 = vmul.f32 %v1096, 1.442695
    %v1112 = vpow.pop %v1111
    %v1113 = vsel %vm464, %v1098, 0.0
    %1114 = vadd.xlane.f32.xlu0 %v1113
    %v1115 = vpop.xlane.xlu0 %1114
    %v1116 = vsel %vm464, %v1100, 0.0
    %1117 = vadd.xlane.f32.xlu0 %v1116
    %v1118 = vpop.xlane.xlu0 %1117
    %v1119 = vsel %vm464, %v1102, 0.0
    %1120 = vadd.xlane.f32.xlu0 %v1119
    %v1121 = vpop.xlane.xlu0 %1120
    %v1122 = vsel %vm464, %v1104, 0.0
    %1123 = vadd.xlane.f32.xlu0 %v1122
    %v1124 = vpop.xlane.xlu0 %1123
    %v1125 = vsel %vm464, %v1106, 0.0
    %1126 = vadd.xlane.f32.xlu0 %v1125
    %v1127 = vpop.xlane.xlu0 %1126
    %v1128 = vsel %vm464, %v1108, 0.0
    %1129 = vadd.xlane.f32.xlu0 %v1128
    %v1130 = vpop.xlane.xlu0 %1129
    %v1131 = vsel %vm464, %v1110, 0.0
    %1132 = vadd.xlane.f32.xlu0 %v1131
    %v1133 = vpop.xlane.xlu0 %1132
    %v1134 = vsel %vm464, %v1112, 0.0
    %1135 = vadd.xlane.f32.xlu0 %v1134
    %v1136 = vpop.xlane.xlu0 %1135
    %v1137 = vrcp.pop %v1115
    %v1138 = vmul.f32 1.0, %v1137
    %v1139 = vrcp.pop %v1118
    %v1140 = vmul.f32 1.0, %v1139
    %v1141 = vrcp.pop %v1121
    %v1142 = vmul.f32 1.0, %v1141
    %v1143 = vrcp.pop %v1124
    %v1144 = vmul.f32 1.0, %v1143
    %v1145 = vrcp.pop %v1127
    %v1146 = vmul.f32 1.0, %v1145
    %v1147 = vrcp.pop %v1130
    %v1148 = vmul.f32 1.0, %v1147
    %v1149 = vrcp.pop %v1133
    %v1150 = vmul.f32 1.0, %v1149
    %v1151 = vrcp.pop %v1136
    %v1152 = vmul.f32 1.0, %v1151
    %v1153 = vmul.f32 %v1098, %v1138
    %v1154 = vmul.f32 %v1100, %v1140
    %v1155 = vmul.f32 %v1102, %v1142
    %v1156 = vmul.f32 %v1104, %v1144
    %v1157 = vmul.f32 %v1106, %v1146
    %v1158 = vmul.f32 %v1108, %v1148
    %v1159 = vmul.f32 %v1110, %v1150
    %v1160 = vmul.f32 %v1112, %v1152
    %v1162 = vsel %vm464, %v1153, 0
    %1164 = vmatprep.subr.mxu0 0.0
    %1165 = vmatpush1.msra.mxu0 0.0
    %1166 = vmatprep.subr.mxu0 0.0
    %1167 = vmatpush1.msra.mxu0 0.0
    %1168 = vmatprep.subr.mxu0 0.0
    %1169 = vmatpush1.msra.mxu0 0.0
    %1170 = vmatprep.subr.mxu0 0.0
    %1171 = vmatpush1.msra.mxu0 0.0
    %1172 = vmatprep.subr.mxu0 0.0
    %1173 = vmatpush1.msra.mxu0 0.0
    %1174 = vmatprep.subr.mxu0 0.0
    %1175 = vmatpush1.msra.mxu0 0.0
    %1176 = vmatprep.subr.mxu0 0.0
    %1177 = vmatpush1.msra.mxu0 0.0
    %1178 = vmatprep.subr.mxu0 0.0
    %1179 = vmatpush1.msra.mxu0 0.0
    %1180 = vmatprep.subr.mxu0 0.0
    %1181 = vmatpush1.msra.mxu0 0.0
    %1182 = vmatprep.subr.mxu0 0.0
    %1183 = vmatpush1.msra.mxu0 0.0
    %1184 = vmatprep.subr.mxu0 0.0
    %1185 = vmatpush1.msra.mxu0 0.0
    %1186 = vmatprep.subr.mxu0 0.0
    %1187 = vmatpush1.msra.mxu0 0.0
    %1188 = vmatprep.subr.mxu0 0.0
    %1189 = vmatpush1.msra.mxu0 0.0
    %1190 = vmatprep.subr.mxu0 0.0
    %1191 = vmatpush1.msra.mxu0 0.0
    %1192 = vmatprep.subr.mxu0 0.0
    %1193 = vmatpush1.msra.mxu0 0.0
    %1194 = vmatprep.subr.mxu0 0.0
    %1195 = vmatpush1.msra.mxu0 %v408
    %1196 = vmatprep.subr.mxu0 0.0
    %1197 = vmatpush2.msra.mxu0 0.0
    %1198 = vmatprep.subr.mxu0 0.0
    %1199 = vmatpush2.msra.mxu0 0.0
    %1200 = vmatprep.subr.mxu0 0.0
    %1201 = vmatpush2.msra.mxu0 0.0
    %1202 = vmatprep.subr.mxu0 0.0
    %1203 = vmatpush2.msra.mxu0 0.0
    %1204 = vmatprep.subr.mxu0 0.0
    %1205 = vmatpush2.msra.mxu0 0.0
    %1206 = vmatprep.subr.mxu0 0.0
    %1207 = vmatpush2.msra.mxu0 0.0
    %1208 = vmatprep.subr.mxu0 0.0
    %1209 = vmatpush2.msra.mxu0 0.0
    %1210 = vmatprep.subr.mxu0 0.0
    %1211 = vmatpush2.msra.mxu0 0.0
    %1212 = vmatprep.subr.mxu0 0.0
    %1213 = vmatpush2.msra.mxu0 0.0
    %1214 = vmatprep.subr.mxu0 0.0
    %1215 = vmatpush2.msra.mxu0 0.0
    %1216 = vmatprep.subr.mxu0 0.0
    %1217 = vmatpush2.msra.mxu0 0.0
    %1218 = vmatprep.subr.mxu0 0.0
    %1219 = vmatpush2.msra.mxu0 0.0
    %1220 = vmatprep.subr.mxu0 0.0
    %1221 = vmatpush2.msra.mxu0 0.0
    %1222 = vmatprep.subr.mxu0 0.0
    %1223 = vmatpush2.msra.mxu0 0.0
    %1224 = vmatprep.subr.mxu0 0.0
    %1225 = vmatpush2.msra.mxu0 0.0
    %1226 = vmatprep.subr.mxu0 0.0
    %1227 = vmatpush2.msra.mxu0 0.0
    %1228 = vmatprep.mubr.f32.mxu0 0.0
    %1229 = vmatmul.mubr.f32.gmra.mxu0 %v1162
    %v1230 = vpop.f32.mrf.mxu0
    %v1231 = vadd.f32 0.0, %v1230
    %v1232 = vpop.f32.mrf.mxu0
    %1233 = vdwg.mxu0
    %v1235 = vsel %vm464, %v1154, 0
    %1237 = vmatprep.subr.mxu0 0.0
    %1238 = vmatpush1.msra.mxu0 0.0
    %1239 = vmatprep.subr.mxu0 0.0
    %1240 = vmatpush1.msra.mxu0 0.0
    %1241 = vmatprep.subr.mxu0 0.0
    %1242 = vmatpush1.msra.mxu0 0.0
    %1243 = vmatprep.subr.mxu0 0.0
    %1244 = vmatpush1.msra.mxu0 0.0
    %1245 = vmatprep.subr.mxu0 0.0
    %1246 = vmatpush1.msra.mxu0 0.0
    %1247 = vmatprep.subr.mxu0 0.0
    %1248 = vmatpush1.msra.mxu0 0.0
    %1249 = vmatprep.subr.mxu0 0.0
    %1250 = vmatpush1.msra.mxu0 0.0
    %1251 = vmatprep.subr.mxu0 0.0
    %1252 = vmatpush1.msra.mxu0 0.0
    %1253 = vmatprep.subr.mxu0 0.0
    %1254 = vmatpush1.msra.mxu0 0.0
    %1255 = vmatprep.subr.mxu0 0.0
    %1256 = vmatpush1.msra.mxu0 0.0
    %1257 = vmatprep.subr.mxu0 0.0
    %1258 = vmatpush1.msra.mxu0 0.0
    %1259 = vmatprep.subr.mxu0 0.0
    %1260 = vmatpush1.msra.mxu0 0.0
    %1261 = vmatprep.subr.mxu0 0.0
    %1262 = vmatpush1.msra.mxu0 0.0
    %1263 = vmatprep.subr.mxu0 0.0
    %1264 = vmatpush1.msra.mxu0 0.0
    %1265 = vmatprep.subr.mxu0 0.0
    %1266 = vmatpush1.msra.mxu0 0.0
    %1267 = vmatprep.subr.mxu0 0.0
    %1268 = vmatpush1.msra.mxu0 %v413
    %1269 = vmatprep.subr.mxu0 0.0
    %1270 = vmatpush2.msra.mxu0 0.0
    %1271 = vmatprep.subr.mxu0 0.0
    %1272 = vmatpush2.msra.mxu0 0.0
    %1273 = vmatprep.subr.mxu0 0.0
    %1274 = vmatpush2.msra.mxu0 0.0
    %1275 = vmatprep.subr.mxu0 0.0
    %1276 = vmatpush2.msra.mxu0 0.0
    %1277 = vmatprep.subr.mxu0 0.0
    %1278 = vmatpush2.msra.mxu0 0.0
    %1279 = vmatprep.subr.mxu0 0.0
    %1280 = vmatpush2.msra.mxu0 0.0
    %1281 = vmatprep.subr.mxu0 0.0
    %1282 = vmatpush2.msra.mxu0 0.0
    %1283 = vmatprep.subr.mxu0 0.0
    %1284 = vmatpush2.msra.mxu0 0.0
    %1285 = vmatprep.subr.mxu0 0.0
    %1286 = vmatpush2.msra.mxu0 0.0
    %1287 = vmatprep.subr.mxu0 0.0
    %1288 = vmatpush2.msra.mxu0 0.0
    %1289 = vmatprep.subr.mxu0 0.0
    %1290 = vmatpush2.msra.mxu0 0.0
    %1291 = vmatprep.subr.mxu0 0.0
    %1292 = vmatpush2.msra.mxu0 0.0
    %1293 = vmatprep.subr.mxu0 0.0
    %1294 = vmatpush2.msra.mxu0 0.0
    %1295 = vmatprep.subr.mxu0 0.0
    %1296 = vmatpush2.msra.mxu0 0.0
    %1297 = vmatprep.subr.mxu0 0.0
    %1298 = vmatpush2.msra.mxu0 0.0
    %1299 = vmatprep.subr.mxu0 0.0
    %1300 = vmatpush2.msra.mxu0 0.0
    %1301 = vmatprep.mubr.f32.mxu0 0.0
    %1302 = vmatmul.mubr.f32.gmra.mxu0 %v1235
    %v1303 = vpop.f32.mrf.mxu0
    %v1304 = vadd.f32 0.0, %v1303
    %v1305 = vpop.f32.mrf.mxu0
    %1306 = vdwg.mxu0
    %v1308 = vsel %vm464, %v1155, 0
    %1310 = vmatprep.subr.mxu0 0.0
    %1311 = vmatpush1.msra.mxu0 0.0
    %1312 = vmatprep.subr.mxu0 0.0
    %1313 = vmatpush1.msra.mxu0 0.0
    %1314 = vmatprep.subr.mxu0 0.0
    %1315 = vmatpush1.msra.mxu0 0.0
    %1316 = vmatprep.subr.mxu0 0.0
    %1317 = vmatpush1.msra.mxu0 0.0
    %1318 = vmatprep.subr.mxu0 0.0
    %1319 = vmatpush1.msra.mxu0 0.0
    %1320 = vmatprep.subr.mxu0 0.0
    %1321 = vmatpush1.msra.mxu0 0.0
    %1322 = vmatprep.subr.mxu0 0.0
    %1323 = vmatpush1.msra.mxu0 0.0
    %1324 = vmatprep.subr.mxu0 0.0
    %1325 = vmatpush1.msra.mxu0 0.0
    %1326 = vmatprep.subr.mxu0 0.0
    %1327 = vmatpush1.msra.mxu0 0.0
    %1328 = vmatprep.subr.mxu0 0.0
    %1329 = vmatpush1.msra.mxu0 0.0
    %1330 = vmatprep.subr.mxu0 0.0
    %1331 = vmatpush1.msra.mxu0 0.0
    %1332 = vmatprep.subr.mxu0 0.0
    %1333 = vmatpush1.msra.mxu0 0.0
    %1334 = vmatprep.subr.mxu0 0.0
    %1335 = vmatpush1.msra.mxu0 0.0
    %1336 = vmatprep.subr.mxu0 0.0
    %1337 = vmatpush1.msra.mxu0 0.0
    %1338 = vmatprep.subr.mxu0 0.0
    %1339 = vmatpush1.msra.mxu0 0.0
    %1340 = vmatprep.subr.mxu0 0.0
    %1341 = vmatpush1.msra.mxu0 %v447
    %1342 = vmatprep.subr.mxu0 0.0
    %1343 = vmatpush2.msra.mxu0 0.0
    %1344 = vmatprep.subr.mxu0 0.0
    %1345 = vmatpush2.msra.mxu0 0.0
    %1346 = vmatprep.subr.mxu0 0.0
    %1347 = vmatpush2.msra.mxu0 0.0
    %1348 = vmatprep.subr.mxu0 0.0
    %1349 = vmatpush2.msra.mxu0 0.0
    %1350 = vmatprep.subr.mxu0 0.0
    %1351 = vmatpush2.msra.mxu0 0.0
    %1352 = vmatprep.subr.mxu0 0.0
    %1353 = vmatpush2.msra.mxu0 0.0
    %1354 = vmatprep.subr.mxu0 0.0
    %1355 = vmatpush2.msra.mxu0 0.0
    %1356 = vmatprep.subr.mxu0 0.0
    %1357 = vmatpush2.msra.mxu0 0.0
    %1358 = vmatprep.subr.mxu0 0.0
    %1359 = vmatpush2.msra.mxu0 0.0
    %1360 = vmatprep.subr.mxu0 0.0
    %1361 = vmatpush2.msra.mxu0 0.0
    %1362 = vmatprep.subr.mxu0 0.0
    %1363 = vmatpush2.msra.mxu0 0.0
    %1364 = vmatprep.subr.mxu0 0.0
    %1365 = vmatpush2.msra.mxu0 0.0
    %1366 = vmatprep.subr.mxu0 0.0
    %1367 = vmatpush2.msra.mxu0 0.0
    %1368 = vmatprep.subr.mxu0 0.0
    %1369 = vmatpush2.msra.mxu0 0.0
    %1370 = vmatprep.subr.mxu0 0.0
    %1371 = vmatpush2.msra.mxu0 0.0
    %1372 = vmatprep.subr.mxu0 0.0
    %1373 = vmatpush2.msra.mxu0 0.0
    %1374 = vmatprep.mubr.f32.mxu0 0.0
    %1375 = vmatmul.mubr.f32.gmra.mxu0 %v1308
    %v1376 = vpop.f32.mrf.mxu0
    %v1377 = vadd.f32 0.0, %v1376
    %v1378 = vpop.f32.mrf.mxu0
    %1379 = vdwg.mxu0
    %v1381 = vsel %vm464, %v1156, 0
    %1383 = vmatprep.subr.mxu0 0.0
    %1384 = vmatpush1.msra.mxu0 0.0
    %1385 = vmatprep.subr.mxu0 0.0
    %1386 = vmatpush1.msra.mxu0 0.0
    %1387 = vmatprep.subr.mxu0 0.0
    %1388 = vmatpush1.msra.mxu0 0.0
    %1389 = vmatprep.subr.mxu0 0.0
    %1390 = vmatpush1.msra.mxu0 0.0
    %1391 = vmatprep.subr.mxu0 0.0
    %1392 = vmatpush1.msra.mxu0 0.0
    %1393 = vmatprep.subr.mxu0 0.0
    %1394 = vmatpush1.msra.mxu0 0.0
    %1395 = vmatprep.subr.mxu0 0.0
    %1396 = vmatpush1.msra.mxu0 0.0
    %1397 = vmatprep.subr.mxu0 0.0
    %1398 = vmatpush1.msra.mxu0 0.0
    %1399 = vmatprep.subr.mxu0 0.0
    %1400 = vmatpush1.msra.mxu0 0.0
    %1401 = vmatprep.subr.mxu0 0.0
    %1402 = vmatpush1.msra.mxu0 0.0
    %1403 = vmatprep.subr.mxu0 0.0
    %1404 = vmatpush1.msra.mxu0 0.0
    %1405 = vmatprep.subr.mxu0 0.0
    %1406 = vmatpush1.msra.mxu0 0.0
    %1407 = vmatprep.subr.mxu0 0.0
    %1408 = vmatpush1.msra.mxu0 0.0
    %1409 = vmatprep.subr.mxu0 0.0
    %1410 = vmatpush1.msra.mxu0 0.0
    %1411 = vmatprep.subr.mxu0 0.0
    %1412 = vmatpush1.msra.mxu0 0.0
    %1413 = vmatprep.subr.mxu0 0.0
    %1414 = vmatpush1.msra.mxu0 %v449
    %1415 = vmatprep.subr.mxu0 0.0
    %1416 = vmatpush2.msra.mxu0 0.0
    %1417 = vmatprep.subr.mxu0 0.0
    %1418 = vmatpush2.msra.mxu0 0.0
    %1419 = vmatprep.subr.mxu0 0.0
    %1420 = vmatpush2.msra.mxu0 0.0
    %1421 = vmatprep.subr.mxu0 0.0
    %1422 = vmatpush2.msra.mxu0 0.0
    %1423 = vmatprep.subr.mxu0 0.0
    %1424 = vmatpush2.msra.mxu0 0.0
    %1425 = vmatprep.subr.mxu0 0.0
    %1426 = vmatpush2.msra.mxu0 0.0
    %1427 = vmatprep.subr.mxu0 0.0
    %1428 = vmatpush2.msra.mxu0 0.0
    %1429 = vmatprep.subr.mxu0 0.0
    %1430 = vmatpush2.msra.mxu0 0.0
    %1431 = vmatprep.subr.mxu0 0.0
    %1432 = vmatpush2.msra.mxu0 0.0
    %1433 = vmatprep.subr.mxu0 0.0
    %1434 = vmatpush2.msra.mxu0 0.0
    %1435 = vmatprep.subr.mxu0 0.0
    %1436 = vmatpush2.msra.mxu0 0.0
    %1437 = vmatprep.subr.mxu0 0.0
    %1438 = vmatpush2.msra.mxu0 0.0
    %1439 = vmatprep.subr.mxu0 0.0
    %1440 = vmatpush2.msra.mxu0 0.0
    %1441 = vmatprep.subr.mxu0 0.0
    %1442 = vmatpush2.msra.mxu0 0.0
    %1443 = vmatprep.subr.mxu0 0.0
    %1444 = vmatpush2.msra.mxu0 0.0
    %1445 = vmatprep.subr.mxu0 0.0
    %1446 = vmatpush2.msra.mxu0 0.0
    %1447 = vmatprep.mubr.f32.mxu0 0.0
    %1448 = vmatmul.mubr.f32.gmra.mxu0 %v1381
    %v1449 = vpop.f32.mrf.mxu0
    %v1450 = vadd.f32 0.0, %v1449
    %v1451 = vpop.f32.mrf.mxu0
    %1452 = vdwg.mxu0
    %v1454 = vsel %vm464, %v1157, 0
    %1456 = vmatprep.subr.mxu0 0.0
    %1457 = vmatpush1.msra.mxu0 0.0
    %1458 = vmatprep.subr.mxu0 0.0
    %1459 = vmatpush1.msra.mxu0 0.0
    %1460 = vmatprep.subr.mxu0 0.0
    %1461 = vmatpush1.msra.mxu0 0.0
    %1462 = vmatprep.subr.mxu0 0.0
    %1463 = vmatpush1.msra.mxu0 0.0
    %1464 = vmatprep.subr.mxu0 0.0
    %1465 = vmatpush1.msra.mxu0 0.0
    %1466 = vmatprep.subr.mxu0 0.0
    %1467 = vmatpush1.msra.mxu0 0.0
    %1468 = vmatprep.subr.mxu0 0.0
    %1469 = vmatpush1.msra.mxu0 0.0
    %1470 = vmatprep.subr.mxu0 0.0
    %1471 = vmatpush1.msra.mxu0 0.0
    %1472 = vmatprep.subr.mxu0 0.0
    %1473 = vmatpush1.msra.mxu0 0.0
    %1474 = vmatprep.subr.mxu0 0.0
    %1475 = vmatpush1.msra.mxu0 0.0
    %1476 = vmatprep.subr.mxu0 0.0
    %1477 = vmatpush1.msra.mxu0 0.0
    %1478 = vmatprep.subr.mxu0 0.0
    %1479 = vmatpush1.msra.mxu0 0.0
    %1480 = vmatprep.subr.mxu0 0.0
    %1481 = vmatpush1.msra.mxu0 0.0
    %1482 = vmatprep.subr.mxu0 0.0
    %1483 = vmatpush1.msra.mxu0 0.0
    %1484 = vmatprep.subr.mxu0 0.0
    %1485 = vmatpush1.msra.mxu0 0.0
    %1486 = vmatprep.subr.mxu0 0.0
    %1487 = vmatpush1.msra.mxu0 %v453
    %1488 = vmatprep.subr.mxu0 0.0
    %1489 = vmatpush2.msra.mxu0 0.0
    %1490 = vmatprep.subr.mxu0 0.0
    %1491 = vmatpush2.msra.mxu0 0.0
    %1492 = vmatprep.subr.mxu0 0.0
    %1493 = vmatpush2.msra.mxu0 0.0
    %1494 = vmatprep.subr.mxu0 0.0
    %1495 = vmatpush2.msra.mxu0 0.0
    %1496 = vmatprep.subr.mxu0 0.0
    %1497 = vmatpush2.msra.mxu0 0.0
    %1498 = vmatprep.subr.mxu0 0.0
    %1499 = vmatpush2.msra.mxu0 0.0
    %1500 = vmatprep.subr.mxu0 0.0
    %1501 = vmatpush2.msra.mxu0 0.0
    %1502 = vmatprep.subr.mxu0 0.0
    %1503 = vmatpush2.msra.mxu0 0.0
    %1504 = vmatprep.subr.mxu0 0.0
    %1505 = vmatpush2.msra.mxu0 0.0
    %1506 = vmatprep.subr.mxu0 0.0
    %1507 = vmatpush2.msra.mxu0 0.0
    %1508 = vmatprep.subr.mxu0 0.0
    %1509 = vmatpush2.msra.mxu0 0.0
    %1510 = vmatprep.subr.mxu0 0.0
    %1511 = vmatpush2.msra.mxu0 0.0
    %1512 = vmatprep.subr.mxu0 0.0
    %1513 = vmatpush2.msra.mxu0 0.0
    %1514 = vmatprep.subr.mxu0 0.0
    %1515 = vmatpush2.msra.mxu0 0.0
    %1516 = vmatprep.subr.mxu0 0.0
    %1517 = vmatpush2.msra.mxu0 0.0
    %1518 = vmatprep.subr.mxu0 0.0
    %1519 = vmatpush2.msra.mxu0 0.0
    %1520 = vmatprep.mubr.f32.mxu0 0.0
    %1521 = vmatmul.mubr.f32.gmra.mxu0 %v1454
    %v1522 = vpop.f32.mrf.mxu0
    %v1523 = vadd.f32 0.0, %v1522
    %v1524 = vpop.f32.mrf.mxu0
    %1525 = vdwg.mxu0
    %v1527 = vsel %vm464, %v1158, 0
    %1529 = vmatprep.subr.mxu0 0.0
    %1530 = vmatpush1.msra.mxu0 0.0
    %1531 = vmatprep.subr.mxu0 0.0
    %1532 = vmatpush1.msra.mxu0 0.0
    %1533 = vmatprep.subr.mxu0 0.0
    %1534 = vmatpush1.msra.mxu0 0.0
    %1535 = vmatprep.subr.mxu0 0.0
    %1536 = vmatpush1.msra.mxu0 0.0
    %1537 = vmatprep.subr.mxu0 0.0
    %1538 = vmatpush1.msra.mxu0 0.0
    %1539 = vmatprep.subr.mxu0 0.0
    %1540 = vmatpush1.msra.mxu0 0.0
    %1541 = vmatprep.subr.mxu0 0.0
    %1542 = vmatpush1.msra.mxu0 0.0
    %1543 = vmatprep.subr.mxu0 0.0
    %1544 = vmatpush1.msra.mxu0 0.0
    %1545 = vmatprep.subr.mxu0 0.0
    %1546 = vmatpush1.msra.mxu0 0.0
    %1547 = vmatprep.subr.mxu0 0.0
    %1548 = vmatpush1.msra.mxu0 0.0
    %1549 = vmatprep.subr.mxu0 0.0
    %1550 = vmatpush1.msra.mxu0 0.0
    %1551 = vmatprep.subr.mxu0 0.0
    %1552 = vmatpush1.msra.mxu0 0.0
    %1553 = vmatprep.subr.mxu0 0.0
    %1554 = vmatpush1.msra.mxu0 0.0
    %1555 = vmatprep.subr.mxu0 0.0
    %1556 = vmatpush1.msra.mxu0 0.0
    %1557 = vmatprep.subr.mxu0 0.0
    %1558 = vmatpush1.msra.mxu0 0.0
    %1559 = vmatprep.subr.mxu0 0.0
    %1560 = vmatpush1.msra.mxu0 %v455
    %1561 = vmatprep.subr.mxu0 0.0
    %1562 = vmatpush2.msra.mxu0 0.0
    %1563 = vmatprep.subr.mxu0 0.0
    %1564 = vmatpush2.msra.mxu0 0.0
    %1565 = vmatprep.subr.mxu0 0.0
    %1566 = vmatpush2.msra.mxu0 0.0
    %1567 = vmatprep.subr.mxu0 0.0
    %1568 = vmatpush2.msra.mxu0 0.0
    %1569 = vmatprep.subr.mxu0 0.0
    %1570 = vmatpush2.msra.mxu0 0.0
    %1571 = vmatprep.subr.mxu0 0.0
    %1572 = vmatpush2.msra.mxu0 0.0
    %1573 = vmatprep.subr.mxu0 0.0
    %1574 = vmatpush2.msra.mxu0 0.0
    %1575 = vmatprep.subr.mxu0 0.0
    %1576 = vmatpush2.msra.mxu0 0.0
    %1577 = vmatprep.subr.mxu0 0.0
    %1578 = vmatpush2.msra.mxu0 0.0
    %1579 = vmatprep.subr.mxu0 0.0
    %1580 = vmatpush2.msra.mxu0 0.0
    %1581 = vmatprep.subr.mxu0 0.0
    %1582 = vmatpush2.msra.mxu0 0.0
    %1583 = vmatprep.subr.mxu0 0.0
    %1584 = vmatpush2.msra.mxu0 0.0
    %1585 = vmatprep.subr.mxu0 0.0
    %1586 = vmatpush2.msra.mxu0 0.0
    %1587 = vmatprep.subr.mxu0 0.0
    %1588 = vmatpush2.msra.mxu0 0.0
    %1589 = vmatprep.subr.mxu0 0.0
    %1590 = vmatpush2.msra.mxu0 0.0
    %1591 = vmatprep.subr.mxu0 0.0
    %1592 = vmatpush2.msra.mxu0 0.0
    %1593 = vmatprep.mubr.f32.mxu0 0.0
    %1594 = vmatmul.mubr.f32.gmra.mxu0 %v1527
    %v1595 = vpop.f32.mrf.mxu0
    %v1596 = vadd.f32 0.0, %v1595
    %v1597 = vpop.f32.mrf.mxu0
    %1598 = vdwg.mxu0
    %v1600 = vsel %vm464, %v1159, 0
    %1602 = vmatprep.subr.mxu0 0.0
    %1603 = vmatpush1.msra.mxu0 0.0
    %1604 = vmatprep.subr.mxu0 0.0
    %1605 = vmatpush1.msra.mxu0 0.0
    %1606 = vmatprep.subr.mxu0 0.0
    %1607 = vmatpush1.msra.mxu0 0.0
    %1608 = vmatprep.subr.mxu0 0.0
    %1609 = vmatpush1.msra.mxu0 0.0
    %1610 = vmatprep.subr.mxu0 0.0
    %1611 = vmatpush1.msra.mxu0 0.0
    %1612 = vmatprep.subr.mxu0 0.0
    %1613 = vmatpush1.msra.mxu0 0.0
    %1614 = vmatprep.subr.mxu0 0.0
    %1615 = vmatpush1.msra.mxu0 0.0
    %1616 = vmatprep.subr.mxu0 0.0
    %1617 = vmatpush1.msra.mxu0 0.0
    %1618 = vmatprep.subr.mxu0 0.0
    %1619 = vmatpush1.msra.mxu0 0.0
    %1620 = vmatprep.subr.mxu0 0.0
    %1621 = vmatpush1.msra.mxu0 0.0
    %1622 = vmatprep.subr.mxu0 0.0
    %1623 = vmatpush1.msra.mxu0 0.0
    %1624 = vmatprep.subr.mxu0 0.0
    %1625 = vmatpush1.msra.mxu0 0.0
    %1626 = vmatprep.subr.mxu0 0.0
    %1627 = vmatpush1.msra.mxu0 0.0
    %1628 = vmatprep.subr.mxu0 0.0
    %1629 = vmatpush1.msra.mxu0 0.0
    %1630 = vmatprep.subr.mxu0 0.0
    %1631 = vmatpush1.msra.mxu0 0.0
    %1632 = vmatprep.subr.mxu0 0.0
    %1633 = vmatpush1.msra.mxu0 %v459
    %1634 = vmatprep.subr.mxu0 0.0
    %1635 = vmatpush2.msra.mxu0 0.0
    %1636 = vmatprep.subr.mxu0 0.0
    %1637 = vmatpush2.msra.mxu0 0.0
    %1638 = vmatprep.subr.mxu0 0.0
    %1639 = vmatpush2.msra.mxu0 0.0
    %1640 = vmatprep.subr.mxu0 0.0
    %1641 = vmatpush2.msra.mxu0 0.0
    %1642 = vmatprep.subr.mxu0 0.0
    %1643 = vmatpush2.msra.mxu0 0.0
    %1644 = vmatprep.subr.mxu0 0.0
    %1645 = vmatpush2.msra.mxu0 0.0
    %1646 = vmatprep.subr.mxu0 0.0
    %1647 = vmatpush2.msra.mxu0 0.0
    %1648 = vmatprep.subr.mxu0 0.0
    %1649 = vmatpush2.msra.mxu0 0.0
    %1650 = vmatprep.subr.mxu0 0.0
    %1651 = vmatpush2.msra.mxu0 0.0
    %1652 = vmatprep.subr.mxu0 0.0
    %1653 = vmatpush2.msra.mxu0 0.0
    %1654 = vmatprep.subr.mxu0 0.0
    %1655 = vmatpush2.msra.mxu0 0.0
    %1656 = vmatprep.subr.mxu0 0.0
    %1657 = vmatpush2.msra.mxu0 0.0
    %1658 = vmatprep.subr.mxu0 0.0
    %1659 = vmatpush2.msra.mxu0 0.0
    %1660 = vmatprep.subr.mxu0 0.0
    %1661 = vmatpush2.msra.mxu0 0.0
    %1662 = vmatprep.subr.mxu0 0.0
    %1663 = vmatpush2.msra.mxu0 0.0
    %1664 = vmatprep.subr.mxu0 0.0
    %1665 = vmatpush2.msra.mxu0 0.0
    %1666 = vmatprep.mubr.f32.mxu0 0.0
    %1667 = vmatmul.mubr.f32.gmra.mxu0 %v1600
    %v1668 = vpop.f32.mrf.mxu0
    %v1669 = vadd.f32 0.0, %v1668
    %v1670 = vpop.f32.mrf.mxu0
    %1671 = vdwg.mxu0
    %v1673 = vsel %vm464, %v1160, 0
    %1675 = vmatprep.subr.mxu0 0.0
    %1676 = vmatpush1.msra.mxu0 0.0
    %1677 = vmatprep.subr.mxu0 0.0
    %1678 = vmatpush1.msra.mxu0 0.0
    %1679 = vmatprep.subr.mxu0 0.0
    %1680 = vmatpush1.msra.mxu0 0.0
    %1681 = vmatprep.subr.mxu0 0.0
    %1682 = vmatpush1.msra.mxu0 0.0
    %1683 = vmatprep.subr.mxu0 0.0
    %1684 = vmatpush1.msra.mxu0 0.0
    %1685 = vmatprep.subr.mxu0 0.0
    %1686 = vmatpush1.msra.mxu0 0.0
    %1687 = vmatprep.subr.mxu0 0.0
    %1688 = vmatpush1.msra.mxu0 0.0
    %1689 = vmatprep.subr.mxu0 0.0
    %1690 = vmatpush1.msra.mxu0 0.0
    %1691 = vmatprep.subr.mxu0 0.0
    %1692 = vmatpush1.msra.mxu0 0.0
    %1693 = vmatprep.subr.mxu0 0.0
    %1694 = vmatpush1.msra.mxu0 0.0
    %1695 = vmatprep.subr.mxu0 0.0
    %1696 = vmatpush1.msra.mxu0 0.0
    %1697 = vmatprep.subr.mxu0 0.0
    %1698 = vmatpush1.msra.mxu0 0.0
    %1699 = vmatprep.subr.mxu0 0.0
    %1700 = vmatpush1.msra.mxu0 0.0
    %1701 = vmatprep.subr.mxu0 0.0
    %1702 = vmatpush1.msra.mxu0 0.0
    %1703 = vmatprep.subr.mxu0 0.0
    %1704 = vmatpush1.msra.mxu0 0.0
    %1705 = vmatprep.subr.mxu0 0.0
    %1706 = vmatpush1.msra.mxu0 %v461
    %1707 = vmatprep.subr.mxu0 0.0
    %1708 = vmatpush2.msra.mxu0 0.0
    %1709 = vmatprep.subr.mxu0 0.0
    %1710 = vmatpush2.msra.mxu0 0.0
    %1711 = vmatprep.subr.mxu0 0.0
    %1712 = vmatpush2.msra.mxu0 0.0
    %1713 = vmatprep.subr.mxu0 0.0
    %1714 = vmatpush2.msra.mxu0 0.0
    %1715 = vmatprep.subr.mxu0 0.0
    %1716 = vmatpush2.msra.mxu0 0.0
    %1717 = vmatprep.subr.mxu0 0.0
    %1718 = vmatpush2.msra.mxu0 0.0
    %1719 = vmatprep.subr.mxu0 0.0
    %1720 = vmatpush2.msra.mxu0 0.0
    %1721 = vmatprep.subr.mxu0 0.0
    %1722 = vmatpush2.msra.mxu0 0.0
    %1723 = vmatprep.subr.mxu0 0.0
    %1724 = vmatpush2.msra.mxu0 0.0
    %1725 = vmatprep.subr.mxu0 0.0
    %1726 = vmatpush2.msra.mxu0 0.0
    %1727 = vmatprep.subr.mxu0 0.0
    %1728 = vmatpush2.msra.mxu0 0.0
    %1729 = vmatprep.subr.mxu0 0.0
    %1730 = vmatpush2.msra.mxu0 0.0
    %1731 = vmatprep.subr.mxu0 0.0
    %1732 = vmatpush2.msra.mxu0 0.0
    %1733 = vmatprep.subr.mxu0 0.0
    %1734 = vmatpush2.msra.mxu0 0.0
    %1735 = vmatprep.subr.mxu0 0.0
    %1736 = vmatpush2.msra.mxu0 0.0
    %1737 = vmatprep.subr.mxu0 0.0
    %1738 = vmatpush2.msra.mxu0 0.0
    %1739 = vmatprep.mubr.f32.mxu0 0.0
    %1740 = vmatmul.mubr.f32.gmra.mxu0 %v1673
    %v1741 = vpop.f32.mrf.mxu0
    %v1742 = vadd.f32 0.0, %v1741
    %v1743 = vpop.f32.mrf.mxu0
    %1744 = vdwg.mxu0
    %1747 = vrot.lane.b32.xlu0 %v1377, 8
    %v1748 = vpop.permute.xlu0 %1747
    %1749 = vrot.lane.b32.xlu0 %v1450, 8
    %v1750 = vpop.permute.xlu0 %1749
    %1755 = vrot.lane.b32.xlu0 %v1523, 16
    %v1756 = vpop.permute.xlu0 %1755
    %1757 = vrot.lane.b32.xlu0 %v1596, 16
    %v1758 = vpop.permute.xlu0 %1757
    %1763 = vrot.lane.b32.xlu0 %v1669, 24
    %v1764 = vpop.permute.xlu0 %1763
    %1765 = vrot.lane.b32.xlu0 %v1742, 24
    %v1766 = vpop.permute.xlu0 %1765
    %v1769 = vsel %vm464, %v1231, %v1748
    %v1770 = vsel %vm464, %v1304, %v1750
    %vm1771 = vcmask 130048
    %v1772 = vsel %vm1771, %v1769, %v1756
    %v1773 = vsel %vm1771, %v1770, %v1758
    %vm1774 = vcmask 195584
    %v1775 = vsel %vm1774, %v1772, %v1764
    %v1776 = vsel %vm1774, %v1773, %v1766
    %v1777 = vld [vmem:[#allocation12] sm:$0xff]
    %v1778 = vld [vmem:[#allocation12 + $0x8] sm:$0xff]
    %v1779 = vld [vmem:[#allocation12 + $0x10] sm:$0xff]
    %v1780 = vld [vmem:[#allocation12 + $0x18] sm:$0xff]
    %v1781 = vld [vmem:[%s10] sm:$0x1]
    %v1783 = vlaneseq
    %v1784 = vshrl.u32 %v1783, 7
    %v1785 = vsub.s32 0, %v1784
    %v1786 = vrot.slane %v1781, %v1785
    %v1789 = vsel %vm146, %v1775, 0
    %v1792 = vsel %vm146, %v1776, 0
    %1794 = vmatprep.subr.mxu0 0.0
    %1795 = vmatpush1.msra.mxu0 0.0
    %1796 = vmatprep.subr.mxu0 0.0
    %1797 = vmatpush1.msra.mxu0 0.0
    %1798 = vmatprep.subr.mxu0 0.0
    %1799 = vmatpush1.msra.mxu0 0.0
    %1800 = vmatprep.subr.mxu0 0.0
    %1801 = vmatpush1.msra.mxu0 0.0
    %1802 = vmatprep.subr.mxu0 0.0
    %1803 = vmatpush1.msra.mxu0 0.0
    %1804 = vmatprep.subr.mxu0 0.0
    %1805 = vmatpush1.msra.mxu0 0.0
    %1806 = vmatprep.subr.mxu0 0.0
    %1807 = vmatpush1.msra.mxu0 0.0
    %1808 = vmatprep.subr.mxu0 0.0
    %1809 = vmatpush1.msra.mxu0 0.0
    %1810 = vmatprep.subr.mxu0 0.0
    %1811 = vmatpush1.msra.mxu0 0.0
    %1812 = vmatprep.subr.mxu0 0.0
    %1813 = vmatpush1.msra.mxu0 0.0
    %1814 = vmatprep.subr.mxu0 0.0
    %1815 = vmatpush1.msra.mxu0 0.0
    %1816 = vmatprep.subr.mxu0 0.0
    %1817 = vmatpush1.msra.mxu0 0.0
    %1818 = vmatprep.subr.mxu0 0.0
    %1819 = vmatpush1.msra.mxu0 %v1780
    %1820 = vmatprep.subr.mxu0 0.0
    %1821 = vmatpush1.msra.mxu0 %v1779
    %1822 = vmatprep.subr.mxu0 0.0
    %1823 = vmatpush1.msra.mxu0 %v1778
    %1824 = vmatprep.subr.mxu0 0.0
    %1825 = vmatpush1.msra.mxu0 %v1777
    %1826 = vmatprep.subr.mxu0 0.0
    %1827 = vmatpush2.msra.mxu0 0.0
    %1828 = vmatprep.subr.mxu0 0.0
    %1829 = vmatpush2.msra.mxu0 0.0
    %1830 = vmatprep.subr.mxu0 0.0
    %1831 = vmatpush2.msra.mxu0 0.0
    %1832 = vmatprep.subr.mxu0 0.0
    %1833 = vmatpush2.msra.mxu0 0.0
    %1834 = vmatprep.subr.mxu0 0.0
    %1835 = vmatpush2.msra.mxu0 0.0
    %1836 = vmatprep.subr.mxu0 0.0
    %1837 = vmatpush2.msra.mxu0 0.0
    %1838 = vmatprep.subr.mxu0 0.0
    %1839 = vmatpush2.msra.mxu0 0.0
    %1840 = vmatprep.subr.mxu0 0.0
    %1841 = vmatpush2.msra.mxu0 0.0
    %1842 = vmatprep.subr.mxu0 0.0
    %1843 = vmatpush2.msra.mxu0 0.0
    %1844 = vmatprep.subr.mxu0 0.0
    %1845 = vmatpush2.msra.mxu0 0.0
    %1846 = vmatprep.subr.mxu0 0.0
    %1847 = vmatpush2.msra.mxu0 0.0
    %1848 = vmatprep.subr.mxu0 0.0
    %1849 = vmatpush2.msra.mxu0 0.0
    %1850 = vmatprep.subr.mxu0 0.0
    %1851 = vmatpush2.msra.mxu0 0.0
    %1852 = vmatprep.subr.mxu0 0.0
    %1853 = vmatpush2.msra.mxu0 0.0
    %1854 = vmatprep.subr.mxu0 0.0
    %1855 = vmatpush2.msra.mxu0 0.0
    %1856 = vmatprep.subr.mxu0 0.0
    %1857 = vmatpush2.msra.mxu0 0.0
    %1858 = vmatprep.mubr.f32.mxu0 0.0
    %1859 = vmatmul.mubr.f32.gmra.mxu0 %v1789
    %v1860 = vpop.f32.mrf.mxu0
    %v1861 = vadd.f32 %v1786, %v1860
    %v1862 = vpop.f32.mrf.mxu0
    %1863 = vmatprep.mubr.f32.mxu0 0.0
    %1864 = vmatmul.mubr.f32.gmra.mxu0 %v1792
    %v1865 = vpop.f32.mrf.mxu0
    %v1866 = vadd.f32 %v1786, %v1865
    %v1867 = vpop.f32.mrf.mxu0
    %1868 = vdwg.mxu0
    %1869 = vrot.lane.b32.xlu0 %v1155, 8
    %v1870 = vpop.permute.xlu0 %1869
    %1871 = vrot.lane.b32.xlu0 %v1156, 8
    %v1872 = vpop.permute.xlu0 %1871
    %1875 = vrot.lane.b32.xlu0 %v1157, 16
    %v1876 = vpop.permute.xlu0 %1875
    %1877 = vrot.lane.b32.xlu0 %v1158, 16
    %v1878 = vpop.permute.xlu0 %1877
    %1881 = vrot.lane.b32.xlu0 %v1159, 24
    %v1882 = vpop.permute.xlu0 %1881
    %1883 = vrot.lane.b32.xlu0 %v1160, 24
    %v1884 = vpop.permute.xlu0 %1883
    %v1887 = vsel %vm464, %v1153, %v1870
    %v1888 = vsel %vm464, %v1154, %v1872
    %v1889 = vsel %vm1771, %v1887, %v1876
    %v1890 = vsel %vm1771, %v1888, %v1878
    %v1891 = vsel %vm1774, %v1889, %v1882
    %v1892 = vsel %vm1774, %v1890, %v1884
    %1895 = vrot.lane.b32.xlu0 %v1891, 32
    %v1896 = vpop.permute.xlu0 %1895
    %1897 = vrot.lane.b32.xlu0 %v1892, 32
    %v1898 = vpop.permute.xlu0 %1897
    %v1901 = vsel %vm146, %v1861, %v1896
    %v1902 = vsel %vm146, %v1866, %v1898
    %vm1903 = vcmask 523264
    %1904 = vst.msk [vmem:[%s11] sm:$0xff] %vm1903, %v1901
    %1905 = vst.msk [vmem:[%s11 + $0x8] sm:$0xff] %vm1903, %v1902
    // Predicated region
    $region74: #{multi_head_attention.1} parent=1 // pred_check
      _
    $region75: #{multi_head_attention.1} parent=1 // pred_check_branch
      %1907 = sbr.rel (0) target = $region77
    $region76: #{multi_head_attention.1} parent=1 // pred_region
      _
    $region77: #{multi_head_attention.1} parent=1 // pred_fallthru
      _
    // Predicated region
    $region78: #{multi_head_attention.1} parent=1 // pred_check
      _
    $region79: #{multi_head_attention.1} parent=1 // pred_check_branch
      %1909 = sbr.rel (0) target = $region81
    $region80: #{multi_head_attention.1} parent=1 // pred_region
      _
    $region81: #{multi_head_attention.1} parent=1 // pred_fallthru
      _
    %1910 = vsyncpa [#allocation3], 1
    %1911 = vsyncpa [#allocation5], 1
    %1912 = vsyncpa [#allocation8], 1
    %1913 = vsyncpa [#allocation11], 1

</llo_original>
